<compile_context>
chip_gen: v7x
topology: tpu7x:2x2x1
jax: 0.10.0
libtpu: 0.0.40
codegen_flags: <defaults>
</compile_context>

<pallas_src>
import jax
import jax.numpy as jnp
from jax.experimental import pallas as pl
from jax.experimental.pallas import tpu as pltpu

DIM = 8          # feature dimension
HIDDEN = 32      # hidden width of each coupling MLP
DEPTH = 2        # number of coupling layers (== number of masks)
H2 = 2 * HIDDEN          # 64: fused hidden width  [s-half | t-half]
W_ROWS = H2 + 2 * DIM    # 80: rows of the W2^T / W3^T slab

BATCH = 1024
TILE_B = 512     # batch tile mapped to the LANE axis (multiple of 128); grid = 2

# Set to jnp.bfloat16 on v6e/v7x for faster MXU dots (f32 accumulation kept);
# the correctness tolerance in __main__ is relaxed automatically.
MXU_DTYPE = jnp.float32


# ---------------------------------------------------------------------------
# Kernel: one batch tile (in lanes) per grid step; all parameters resident.
# ---------------------------------------------------------------------------
def realnvp_kernel(sls_ref, x_ref, w1_ref, w_ref, b_ref, v_ref, y_ref, ld_ref):
    f32 = jnp.float32
    tb = x_ref.shape[1]

    exp_ls = v_ref[:, 0:1]        # (DIM, 1)  exp(log_sigma), precomputed
    mu = v_ref[:, 1:2]            # (DIM, 1)

    # --- ActNorm (batch in lanes) ---
    y = x_ref[...] * exp_ls + mu                        # (DIM, TB)
    logdet = jnp.zeros((1, tb), f32) + sls_ref[0]       # (1, TB), sum(log_sigma)

    # --- coupling layers (static unroll over DEPTH) ---
    for d in range(DEPTH):
        base = 2 + 3 * d
        scale = v_ref[:, base:base + 1]                 # (DIM, 1)
        mask = v_ref[:, base + 1:base + 2]              # (DIM, 1)
        om = v_ref[:, base + 2:base + 3]                # (DIM, 1) = 1 - mask

        w1t = w1_ref[:, d * DIM:(d + 1) * DIM]          # (2H, DIM)  mask folded in
        w2t = w_ref[0:H2, d * H2:(d + 1) * H2]          # (2H, 2H)   blockdiag(sW2^T, tW2^T)
        w3t = w_ref[H2:W_ROWS, d * H2:(d + 1) * H2]     # (2DIM, 2H) blockdiag(sW3^T, tW3^T)
        b1 = b_ref[:, 3 * d:3 * d + 1]                  # (2H, 1)
        b2 = b_ref[:, 3 * d + 1:3 * d + 2]              # (2H, 1)
        b3 = b_ref[0:2 * DIM, 3 * d + 2:3 * d + 3]      # (2DIM, 1)

        # fused s/t MLP, transposed: h^T = W^T @ a^T  (MXU N = TILE_B lanes)
        h = jnp.maximum(
            jnp.dot(w1t, y.astype(w1t.dtype), preferred_element_type=f32) + b1, 0.0)
        h = jnp.maximum(
            jnp.dot(w2t, h.astype(w2t.dtype), preferred_element_type=f32) + b2, 0.0)
        h = jnp.dot(w3t, h.astype(w3t.dtype), preferred_element_type=f32) + b3

        s = jnp.maximum(h[0:DIM, :], 0.0) * scale       # scale head: relu + learned scale
        t = h[DIM:2 * DIM, :]                           # translation head: no activation

        y = mask * y + om * (y * jnp.exp(s) + t)
        logdet = logdet + jnp.sum(om * s, axis=0, keepdims=True)   # sublane reduce

    y_ref[...] = y
    ld_ref[...] = logdet


# ---------------------------------------------------------------------------
# Wrapper: pack parameters (transposed, fused, lane-dense), launch the kernel.
# ---------------------------------------------------------------------------
def _block_diag(a, b):
    ka, na = a.shape
    kb, nb = b.shape
    out = jnp.zeros((ka + kb, na + nb), a.dtype)
    out = out.at[:ka, :na].set(a)
    out = out.at[ka:, na:].set(b)
    return out


def pack_params(p):
    f32 = jnp.float32
    w1_cols, w_cols, b_cols = [], [], []
    for d in range(DEPTH):
        mask = p["masks"][d].reshape(DIM, 1)

        # layer-1 fused weight, transposed, binary mask folded into the
        # (zeroed) input-feature columns -> kernel skips `xm = y * mask`.
        w1 = jnp.concatenate([p["sW1"][d], p["tW1"][d]], axis=-1)      # (DIM, 2H)
        w1 = w1 * mask
        w1_cols.append(w1.T)                                           # (2H, DIM)

        # layers 2/3: block-diagonal s/t fusion, transposed; depths packed
        # side-by-side along lanes -> (80, 128) lane-dense slab.
        w2t = _block_diag(p["sW2"][d].T, p["tW2"][d].T)                # (2H, 2H)
        w3t = _block_diag(p["sW3"][d].T, p["tW3"][d].T)                # (2DIM, 2H)
        w_cols.append(jnp.concatenate([w2t, w3t], axis=0))             # (80, 2H)

        # biases as column vectors (broadcast over the lane/batch axis)
        b1 = jnp.concatenate([p["sb1"][d], p["tb1"][d]], axis=-1).reshape(H2, 1)
        b2 = jnp.concatenate([p["sb2"][d], p["tb2"][d]], axis=-1).reshape(H2, 1)
        b3 = jnp.concatenate([p["sb3"][d], p["tb3"][d]], axis=-1).reshape(2 * DIM, 1)
        b3 = jnp.pad(b3, ((0, H2 - 2 * DIM), (0, 0)))                  # pad rows; never read
        b_cols += [b1, b2, b3]

    w1slab = jnp.concatenate(w1_cols, axis=-1).astype(MXU_DTYPE)       # (2H, DEPTH*DIM)
    wslab = jnp.concatenate(w_cols, axis=-1).astype(MXU_DTYPE)         # (80, DEPTH*2H)
    bslab = jnp.concatenate(b_cols, axis=-1).astype(f32)               # (2H, 3*DEPTH)

    # per-feature vector slab: exp(log_sigma), mu, then (scale, mask, 1-mask)
    vcols = [jnp.exp(p["log_sigma"]).reshape(DIM, 1),
             p["mu"].reshape(DIM, 1)]
    for d in range(DEPTH):
        m = p["masks"][d].reshape(DIM, 1)
        vcols += [p["scale"][d].reshape(DIM, 1), m, 1.0 - m]
    vslab = jnp.concatenate(vcols, axis=-1).astype(f32)                # (DIM, 2+3*DEPTH)

    sls = jnp.sum(p["log_sigma"]).reshape(1).astype(f32)               # SMEM scalar
    return sls, w1slab, wslab, bslab, vslab


def realnvp_forward(x, p):
    B = x.shape[0]
    assert B % TILE_B == 0 and TILE_B % 128 == 0
    sls, w1slab, wslab, bslab, vslab = pack_params(p)

    xT = x.T  # one-time layout plumbing: batch -> lane axis

    flops = B * DEPTH * 2 * (H2 * DIM + H2 * H2 + 2 * DIM * H2)
    transcendentals = B * DIM * DEPTH
    bytes_accessed = 4 * int(x.size + w1slab.size + wslab.size + bslab.size
                             + vslab.size + B * DIM + B)

    yT, ld = pl.pallas_call(
        realnvp_kernel,
        out_shape=(jax.ShapeDtypeStruct((DIM, B), jnp.float32),
                   jax.ShapeDtypeStruct((1, B), jnp.float32)),
        grid=(B // TILE_B,),
        in_specs=[
            pl.BlockSpec(memory_space=pltpu.MemorySpace.SMEM),          # sum(log_sigma)
            pl.BlockSpec((DIM, TILE_B), lambda i: (0, i)),              # x^T: batch in lanes
            pl.BlockSpec((H2, DEPTH * DIM), lambda i: (0, 0)),          # W1^T slab: resident
            pl.BlockSpec((W_ROWS, DEPTH * H2), lambda i: (0, 0)),       # W2^T/W3^T slab: resident
            pl.BlockSpec((H2, 3 * DEPTH), lambda i: (0, 0)),            # bias slab: resident
            pl.BlockSpec((DIM, 2 + 3 * DEPTH), lambda i: (0, 0)),       # vectors: resident
        ],
        out_specs=(pl.BlockSpec((DIM, TILE_B), lambda i: (0, i)),       # y^T
                   pl.BlockSpec((1, TILE_B), lambda i: (0, i))),        # logdet (lane-dense)
        compiler_params=pltpu.CompilerParams(
            dimension_semantics=("parallel",)),
        cost_estimate=pl.CostEstimate(flops=flops,
                                      transcendentals=transcendentals,
                                      bytes_accessed=bytes_accessed),
    )(sls, xT, w1slab, wslab, bslab, vslab)
    return yT.T, ld[0]


# ---------------------------------------------------------------------------
# Deterministic parameter construction (mirrors the module's __init__ shapes).
# ---------------------------------------------------------------------------
def generate_masks(dim, depth=2):
    masks = []
    for i in range(depth):
        if i == 0:
            m = jnp.zeros((dim,), jnp.float32).at[: dim // 2].set(1.0)
        else:
            m = 1.0 - masks[i - 1]
        masks.append(m)
    return jnp.stack(masks).reshape(depth, 1, dim)


def init_params(key):
    keys = iter(jax.random.split(key, 32))

    def linear(fan_in, fan_out):
        # PyTorch nn.Linear default init: U(-1/sqrt(fan_in), 1/sqrt(fan_in)).
        bound = 1.0 / jnp.sqrt(jnp.float32(fan_in))
        W = jax.random.uniform(next(keys), (DEPTH, fan_in, fan_out),
                               jnp.float32, -bound, bound)
        b = jax.random.uniform(next(keys), (DEPTH, 1, fan_out),
                               jnp.float32, -bound, bound)
        return W, b

    p = {}
    p["masks"] = generate_masks(DIM, DEPTH)                       # (DEPTH,1,DIM)
    p["log_sigma"] = 0.1 * jax.random.normal(next(keys), (1, DIM), jnp.float32)
    p["mu"] = 0.1 * jax.random.normal(next(keys), (1, DIM), jnp.float32)
    p["sW1"], p["sb1"] = linear(DIM, HIDDEN)
    p["sW2"], p["sb2"] = linear(HIDDEN, HIDDEN)
    p["sW3"], p["sb3"] = linear(HIDDEN, DIM)
    p["scale"] = jax.random.normal(next(keys), (DEPTH, 1, DIM), jnp.float32)
    p["tW1"], p["tb1"] = linear(DIM, HIDDEN)
    p["tW2"], p["tb2"] = linear(HIDDEN, HIDDEN)
    p["tW3"], p["tb3"] = linear(HIDDEN, DIM)
    return p


# Pure-JAX reference (unfused, batch-major) for correctness checking.
def ref_forward(x, p):
    y = x * jnp.exp(p["log_sigma"]) + p["mu"]
    logdet = jnp.full((x.shape[0],), jnp.sum(p["log_sigma"]), jnp.float32)
    for i in range(DEPTH):
        mask = p["masks"][i]
        xm = y * mask
        s = jax.nn.relu(xm @ p["sW1"][i] + p["sb1"][i])
        s = jax.nn.relu(s @ p["sW2"][i] + p["sb2"][i])
        s = jax.nn.relu(s @ p["sW3"][i] + p["sb3"][i]) * p["scale"][i]
        t = jax.nn.relu(xm @ p["tW1"][i] + p["tb1"][i])
        t = jax.nn.relu(t @ p["tW2"][i] + p["tb2"][i])
        t = t @ p["tW3"][i] + p["tb3"][i]
        y = mask * y + (1 - mask) * (y * jnp.exp(s) + t)
        logdet = logdet + jnp.sum((1 - mask) * s, axis=-1)
    return y, logdet


if __name__ == "__main__":
    key = jax.random.PRNGKey(0)
    kx, kp = jax.random.split(key)
    x = jax.random.normal(kx, (BATCH, DIM), jnp.float32)
    params = init_params(kp)

    y, logdet = realnvp_forward(x, params)
    jax.block_until_ready((y, logdet))

    y_ref, logdet_ref = ref_forward(x, params)
    tol = 1e-5 if MXU_DTYPE == jnp.float32 else 2e-2
    assert jnp.allclose(y, y_ref, atol=tol, rtol=tol)
    assert jnp.allclose(logdet, logdet_ref, atol=tol, rtol=tol)

    # TODO(synk): RealNVP.log_prob (MultivariateNormal prior) is not part of
    # forward() and is left out of the kernel.
    print("KERNEL_OK")
</pallas_src>

<mosaic_0001>
module attributes {stable_mosaic.version = 11 : i64} {
  func.func @realnvp_kernel(%arg0: i32, %arg1: memref<1xf32, #tpu.memory_space<smem>>, %arg2: memref<8x512xf32, #tpu.memory_space<vmem>>, %arg3: memref<64x16xf32, #tpu.memory_space<vmem>>, %arg4: memref<80x128xf32, #tpu.memory_space<vmem>>, %arg5: memref<64x6xf32, #tpu.memory_space<vmem>>, %arg6: memref<8x8xf32, #tpu.memory_space<vmem>>, %arg7: memref<8x512xf32, #tpu.memory_space<vmem>>, %arg8: memref<1x512xf32, #tpu.memory_space<vmem>>) attributes {dimension_semantics = [#tpu.dimension_semantics<parallel>], iteration_bounds = array<i64: 2>, scalar_prefetch = 0 : i64, scratch_operands = 0 : i64, tpu.core_type = #tpu.core_type<tc>, window_params = [{transform_indices = @transform_0, window_bounds = array<i64: 1>}, {transform_indices = @transform_1, window_bounds = array<i64: 8, 512>}, {pipeline_mode = #tpu.pipeline_mode<synchronous>, transform_indices = @transform_2, window_bounds = array<i64: 64, 16>}, {pipeline_mode = #tpu.pipeline_mode<synchronous>, transform_indices = @transform_3, window_bounds = array<i64: 80, 128>}, {pipeline_mode = #tpu.pipeline_mode<synchronous>, transform_indices = @transform_4, window_bounds = array<i64: 64, 6>}, {pipeline_mode = #tpu.pipeline_mode<synchronous>, transform_indices = @transform_5, window_bounds = array<i64: 8, 8>}, {transform_indices = @transform_6, window_bounds = array<i64: 8, 512>}, {transform_indices = @transform_7, window_bounds = array<i64: 1, 512>}]} {
    %c0 = arith.constant 0 : index
    %c0_0 = arith.constant 0 : index
    %0 = vector.load %arg6[%c0, %c0_0] : memref<8x8xf32, #tpu.memory_space<vmem>>, vector<8x1xf32>
    %c0_1 = arith.constant 0 : index
    %c1 = arith.constant 1 : index
    %1 = vector.load %arg6[%c0_1, %c1] : memref<8x8xf32, #tpu.memory_space<vmem>>, vector<8x1xf32>
    %c0_2 = arith.constant 0 : index
    %c0_3 = arith.constant 0 : index
    %2 = vector.load %arg2[%c0_2, %c0_3] : memref<8x512xf32, #tpu.memory_space<vmem>>, vector<8x512xf32>
    %3 = vector.broadcast %0 : vector<8x1xf32> to vector<8x512xf32>
    %4 = arith.mulf %2, %3 : vector<8x512xf32>
    %5 = vector.broadcast %1 : vector<8x1xf32> to vector<8x512xf32>
    %6 = arith.addf %4, %5 : vector<8x512xf32>
    %cst = arith.constant 0.000000e+00 : f32
    %7 = vector.broadcast %cst : f32 to vector<1x512xf32>
    %c0_4 = arith.constant 0 : index
    %8 = memref.load %arg1[%c0_4] : memref<1xf32, #tpu.memory_space<smem>>
    %9 = vector.broadcast %8 : f32 to vector<1x512xf32>
    %10 = arith.addf %7, %9 : vector<1x512xf32>
    %c0_5 = arith.constant 0 : index
    %c2 = arith.constant 2 : index
    %11 = vector.load %arg6[%c0_5, %c2] : memref<8x8xf32, #tpu.memory_space<vmem>>, vector<8x1xf32>
    %c0_6 = arith.constant 0 : index
    %c3 = arith.constant 3 : index
    %12 = vector.load %arg6[%c0_6, %c3] : memref<8x8xf32, #tpu.memory_space<vmem>>, vector<8x1xf32>
    %c0_7 = arith.constant 0 : index
    %c4 = arith.constant 4 : index
    %13 = vector.load %arg6[%c0_7, %c4] : memref<8x8xf32, #tpu.memory_space<vmem>>, vector<8x1xf32>
    %c0_8 = arith.constant 0 : index
    %c0_9 = arith.constant 0 : index
    %14 = vector.load %arg3[%c0_8, %c0_9] : memref<64x16xf32, #tpu.memory_space<vmem>>, vector<64x8xf32>
    %c0_10 = arith.constant 0 : index
    %c0_11 = arith.constant 0 : index
    %15 = vector.load %arg4[%c0_10, %c0_11] : memref<80x128xf32, #tpu.memory_space<vmem>>, vector<64x64xf32>
    %c64 = arith.constant 64 : index
    %c0_12 = arith.constant 0 : index
    %16 = vector.load %arg4[%c64, %c0_12] : memref<80x128xf32, #tpu.memory_space<vmem>>, vector<16x64xf32>
    %c0_13 = arith.constant 0 : index
    %c0_14 = arith.constant 0 : index
    %17 = vector.load %arg5[%c0_13, %c0_14] : memref<64x6xf32, #tpu.memory_space<vmem>>, vector<64x1xf32>
    %c0_15 = arith.constant 0 : index
    %c1_16 = arith.constant 1 : index
    %18 = vector.load %arg5[%c0_15, %c1_16] : memref<64x6xf32, #tpu.memory_space<vmem>>, vector<64x1xf32>
    %c0_17 = arith.constant 0 : index
    %c2_18 = arith.constant 2 : index
    %19 = vector.load %arg5[%c0_17, %c2_18] : memref<64x6xf32, #tpu.memory_space<vmem>>, vector<16x1xf32>
    %cst_19 = arith.constant dense<0.000000e+00> : vector<64x512xf32>
    %20 = tpu.matmul %14, %6, %cst_19 {dimension_numbers = #tpu.dot_dimension_numbers<[1], [0], [0], [1], [0, 0, 1, 1], [], []>} : vector<64x8xf32>, vector<8x512xf32>, vector<64x512xf32> -> vector<64x512xf32>
    %21 = vector.broadcast %17 : vector<64x1xf32> to vector<64x512xf32>
    %22 = arith.addf %20, %21 : vector<64x512xf32>
    %cst_20 = arith.constant 0.000000e+00 : f32
    %23 = vector.broadcast %cst_20 : f32 to vector<64x512xf32>
    %24 = arith.maximumf %22, %23 : vector<64x512xf32>
    %cst_21 = arith.constant dense<0.000000e+00> : vector<64x512xf32>
    %25 = tpu.matmul %15, %24, %cst_21 {dimension_numbers = #tpu.dot_dimension_numbers<[1], [0], [0], [1], [0, 0, 1, 1], [], []>} : vector<64x64xf32>, vector<64x512xf32>, vector<64x512xf32> -> vector<64x512xf32>
    %26 = vector.broadcast %18 : vector<64x1xf32> to vector<64x512xf32>
    %27 = arith.addf %25, %26 : vector<64x512xf32>
    %cst_22 = arith.constant 0.000000e+00 : f32
    %28 = vector.broadcast %cst_22 : f32 to vector<64x512xf32>
    %29 = arith.maximumf %27, %28 : vector<64x512xf32>
    %cst_23 = arith.constant dense<0.000000e+00> : vector<16x512xf32>
    %30 = tpu.matmul %16, %29, %cst_23 {dimension_numbers = #tpu.dot_dimension_numbers<[1], [0], [0], [1], [0, 0, 1, 1], [], []>} : vector<16x64xf32>, vector<64x512xf32>, vector<16x512xf32> -> vector<16x512xf32>
    %31 = vector.broadcast %19 : vector<16x1xf32> to vector<16x512xf32>
    %32 = arith.addf %30, %31 : vector<16x512xf32>
    %33 = vector.extract_strided_slice %32 {offsets = [0, 0], sizes = [8, 512], strides = [1, 1]} : vector<16x512xf32> to vector<8x512xf32>
    %cst_24 = arith.constant 0.000000e+00 : f32
    %34 = vector.broadcast %cst_24 : f32 to vector<8x512xf32>
    %35 = arith.maximumf %33, %34 : vector<8x512xf32>
    %36 = vector.broadcast %11 : vector<8x1xf32> to vector<8x512xf32>
    %37 = arith.mulf %35, %36 : vector<8x512xf32>
    %38 = vector.extract_strided_slice %32 {offsets = [8, 0], sizes = [8, 512], strides = [1, 1]} : vector<16x512xf32> to vector<8x512xf32>
    %39 = vector.broadcast %12 : vector<8x1xf32> to vector<8x512xf32>
    %40 = arith.mulf %39, %6 : vector<8x512xf32>
    %41 = math.exp %37 : vector<8x512xf32>
    %42 = arith.mulf %6, %41 : vector<8x512xf32>
    %43 = arith.addf %42, %38 : vector<8x512xf32>
    %44 = vector.broadcast %13 : vector<8x1xf32> to vector<8x512xf32>
    %45 = arith.mulf %44, %43 : vector<8x512xf32>
    %46 = arith.addf %40, %45 : vector<8x512xf32>
    %47 = vector.broadcast %13 : vector<8x1xf32> to vector<8x512xf32>
    %48 = arith.mulf %47, %37 : vector<8x512xf32>
    %cst_25 = arith.constant dense<0.000000e+00> : vector<512xf32>
    %49 = vector.multi_reduction <add>, %48, %cst_25 [0] : vector<8x512xf32> to vector<512xf32>
    %50 = vector.shape_cast %49 : vector<512xf32> to vector<1x512xf32>
    %51 = arith.addf %10, %50 : vector<1x512xf32>
    %c0_26 = arith.constant 0 : index
    %c5 = arith.constant 5 : index
    %52 = vector.load %arg6[%c0_26, %c5] : memref<8x8xf32, #tpu.memory_space<vmem>>, vector<8x1xf32>
    %c0_27 = arith.constant 0 : index
    %c6 = arith.constant 6 : index
    %53 = vector.load %arg6[%c0_27, %c6] : memref<8x8xf32, #tpu.memory_space<vmem>>, vector<8x1xf32>
    %c0_28 = arith.constant 0 : index
    %c7 = arith.constant 7 : index
    %54 = vector.load %arg6[%c0_28, %c7] : memref<8x8xf32, #tpu.memory_space<vmem>>, vector<8x1xf32>
    %c0_29 = arith.constant 0 : index
    %c8 = arith.constant 8 : index
    %55 = vector.load %arg3[%c0_29, %c8] : memref<64x16xf32, #tpu.memory_space<vmem>>, vector<64x8xf32>
    %c0_30 = arith.constant 0 : index
    %c64_31 = arith.constant 64 : index
    %56 = vector.load %arg4[%c0_30, %c64_31] : memref<80x128xf32, #tpu.memory_space<vmem>>, vector<64x64xf32>
    %c64_32 = arith.constant 64 : index
    %c64_33 = arith.constant 64 : index
    %57 = vector.load %arg4[%c64_32, %c64_33] : memref<80x128xf32, #tpu.memory_space<vmem>>, vector<16x64xf32>
    %c0_34 = arith.constant 0 : index
    %c3_35 = arith.constant 3 : index
    %58 = vector.load %arg5[%c0_34, %c3_35] : memref<64x6xf32, #tpu.memory_space<vmem>>, vector<64x1xf32>
    %c0_36 = arith.constant 0 : index
    %c4_37 = arith.constant 4 : index
    %59 = vector.load %arg5[%c0_36, %c4_37] : memref<64x6xf32, #tpu.memory_space<vmem>>, vector<64x1xf32>
    %c0_38 = arith.constant 0 : index
    %c5_39 = arith.constant 5 : index
    %60 = vector.load %arg5[%c0_38, %c5_39] : memref<64x6xf32, #tpu.memory_space<vmem>>, vector<16x1xf32>
    %cst_40 = arith.constant dense<0.000000e+00> : vector<64x512xf32>
    %61 = tpu.matmul %55, %46, %cst_40 {dimension_numbers = #tpu.dot_dimension_numbers<[1], [0], [0], [1], [0, 0, 1, 1], [], []>} : vector<64x8xf32>, vector<8x512xf32>, vector<64x512xf32> -> vector<64x512xf32>
    %62 = vector.broadcast %58 : vector<64x1xf32> to vector<64x512xf32>
    %63 = arith.addf %61, %62 : vector<64x512xf32>
    %cst_41 = arith.constant 0.000000e+00 : f32
    %64 = vector.broadcast %cst_41 : f32 to vector<64x512xf32>
    %65 = arith.maximumf %63, %64 : vector<64x512xf32>
    %cst_42 = arith.constant dense<0.000000e+00> : vector<64x512xf32>
    %66 = tpu.matmul %56, %65, %cst_42 {dimension_numbers = #tpu.dot_dimension_numbers<[1], [0], [0], [1], [0, 0, 1, 1], [], []>} : vector<64x64xf32>, vector<64x512xf32>, vector<64x512xf32> -> vector<64x512xf32>
    %67 = vector.broadcast %59 : vector<64x1xf32> to vector<64x512xf32>
    %68 = arith.addf %66, %67 : vector<64x512xf32>
    %cst_43 = arith.constant 0.000000e+00 : f32
    %69 = vector.broadcast %cst_43 : f32 to vector<64x512xf32>
    %70 = arith.maximumf %68, %69 : vector<64x512xf32>
    %cst_44 = arith.constant dense<0.000000e+00> : vector<16x512xf32>
    %71 = tpu.matmul %57, %70, %cst_44 {dimension_numbers = #tpu.dot_dimension_numbers<[1], [0], [0], [1], [0, 0, 1, 1], [], []>} : vector<16x64xf32>, vector<64x512xf32>, vector<16x512xf32> -> vector<16x512xf32>
    %72 = vector.broadcast %60 : vector<16x1xf32> to vector<16x512xf32>
    %73 = arith.addf %71, %72 : vector<16x512xf32>
    %74 = vector.extract_strided_slice %73 {offsets = [0, 0], sizes = [8, 512], strides = [1, 1]} : vector<16x512xf32> to vector<8x512xf32>
    %cst_45 = arith.constant 0.000000e+00 : f32
    %75 = vector.broadcast %cst_45 : f32 to vector<8x512xf32>
    %76 = arith.maximumf %74, %75 : vector<8x512xf32>
    %77 = vector.broadcast %52 : vector<8x1xf32> to vector<8x512xf32>
    %78 = arith.mulf %76, %77 : vector<8x512xf32>
    %79 = vector.extract_strided_slice %73 {offsets = [8, 0], sizes = [8, 512], strides = [1, 1]} : vector<16x512xf32> to vector<8x512xf32>
    %80 = vector.broadcast %53 : vector<8x1xf32> to vector<8x512xf32>
    %81 = arith.mulf %80, %46 : vector<8x512xf32>
    %82 = math.exp %78 : vector<8x512xf32>
    %83 = arith.mulf %46, %82 : vector<8x512xf32>
    %84 = arith.addf %83, %79 : vector<8x512xf32>
    %85 = vector.broadcast %54 : vector<8x1xf32> to vector<8x512xf32>
    %86 = arith.mulf %85, %84 : vector<8x512xf32>
    %87 = arith.addf %81, %86 : vector<8x512xf32>
    %88 = vector.broadcast %54 : vector<8x1xf32> to vector<8x512xf32>
    %89 = arith.mulf %88, %78 : vector<8x512xf32>
    %cst_46 = arith.constant dense<0.000000e+00> : vector<512xf32>
    %90 = vector.multi_reduction <add>, %89, %cst_46 [0] : vector<8x512xf32> to vector<512xf32>
    %91 = vector.shape_cast %90 : vector<512xf32> to vector<1x512xf32>
    %92 = arith.addf %51, %91 : vector<1x512xf32>
    %c0_47 = arith.constant 0 : index
    %c0_48 = arith.constant 0 : index
    %93 = vector.load %arg7[%c0_47, %c0_48] : memref<8x512xf32, #tpu.memory_space<vmem>>, vector<8x512xf32>
    tpu.vector_store %arg7[%c0_47, %c0_48], %87 {strides = array<i32>} : memref<8x512xf32, #tpu.memory_space<vmem>>, vector<8x512xf32>,
    %c0_49 = arith.constant 0 : index
    %c0_50 = arith.constant 0 : index
    %94 = vector.load %arg8[%c0_49, %c0_50] : memref<1x512xf32, #tpu.memory_space<vmem>>, vector<1x512xf32>
    tpu.vector_store %arg8[%c0_49, %c0_50], %92 {strides = array<i32>} : memref<1x512xf32, #tpu.memory_space<vmem>>, vector<1x512xf32>,
    return
  }
  func.func @transform_0(%arg0: i32) -> i32 {
    %c0_i32 = arith.constant 0 : i32
    %c0_i32_0 = arith.constant 0 : i32
    return %c0_i32 : i32
  }
  func.func @transform_1(%arg0: i32) -> (i32, i32) {
    %c0_i32 = arith.constant 0 : i32
    %c0_i32_0 = arith.constant 0 : i32
    return %c0_i32, %arg0 : i32, i32
  }
  func.func @transform_2(%arg0: i32) -> (i32, i32) {
    %c0_i32 = arith.constant 0 : i32
    %c0_i32_0 = arith.constant 0 : i32
    %c0_i32_1 = arith.constant 0 : i32
    return %c0_i32, %c0_i32_0 : i32, i32
  }
  func.func @transform_3(%arg0: i32) -> (i32, i32) {
    %c0_i32 = arith.constant 0 : i32
    %c0_i32_0 = arith.constant 0 : i32
    %c0_i32_1 = arith.constant 0 : i32
    return %c0_i32, %c0_i32_0 : i32, i32
  }
  func.func @transform_4(%arg0: i32) -> (i32, i32) {
    %c0_i32 = arith.constant 0 : i32
    %c0_i32_0 = arith.constant 0 : i32
    %c0_i32_1 = arith.constant 0 : i32
    return %c0_i32, %c0_i32_0 : i32, i32
  }
  func.func @transform_5(%arg0: i32) -> (i32, i32) {
    %c0_i32 = arith.constant 0 : i32
    %c0_i32_0 = arith.constant 0 : i32
    %c0_i32_1 = arith.constant 0 : i32
    return %c0_i32, %c0_i32_0 : i32, i32
  }
  func.func @transform_6(%arg0: i32) -> (i32, i32) {
    %c0_i32 = arith.constant 0 : i32
    %c0_i32_0 = arith.constant 0 : i32
    return %c0_i32, %arg0 : i32, i32
  }
  func.func @transform_7(%arg0: i32) -> (i32, i32) {
    %c0_i32 = arith.constant 0 : i32
    %c0_i32_0 = arith.constant 0 : i32
    return %c0_i32, %arg0 : i32, i32
  }
}

</mosaic_0001>

<llo_original>
// kernel: tpu_custom_call.1
$region0: #{tpu_custom_call.1}
  #allocation0 [shape = 'u32[]', space=smem, size = 0x4, offset = 0x4, fixed_abs, tag = 'smem constant byte address 0x4 - core index']
  #allocation1 [shape = 'u32[144,128]{1,0:T(1,128)}', space=vmem, size = 0x12000, scoped, tag = 'internal scratch']
  #allocation2 [shape = 'f32[1]{0:T(128)S(6)}', space=smem, size = 0x200, scoped, tag = 'scoped memory for tpu_custom_call.1']
  %s0 = inlined_call_operand.<no memory space> [shape: f32[1], index: 0, kind: input, shape index: {}]
  %s1 = inlined_call_operand.vmem [shape: f32[8,1024], index: 1, kind: input, shape index: {}]
  %s2 = inlined_call_operand.vmem [shape: f32[64,16], index: 2, kind: input, shape index: {}]
  %s3 = inlined_call_operand.vmem [shape: f32[80,128], index: 3, kind: input, shape index: {}]
  %s4 = inlined_call_operand.vmem [shape: f32[64,6], index: 4, kind: input, shape index: {}]
  %s5 = inlined_call_operand.vmem [shape: f32[8,8], index: 5, kind: input, shape index: {}]
  %s6 = inlined_call_operand.hbm [shape: f32[8,1024], index: 6, kind: output, shape index: {0}]
  %s7 = inlined_call_operand.hbm [shape: f32[1,1024], index: 7, kind: output, shape index: {1}]
  %8 = xla_tuple %s6, %s7
  %s9 = sld [smem:[#allocation0]]
  $region65: #{tpu_custom_call.1} parent=0
    _
  %s11 = ssub.s32 1, %s9
  %s12 = scalar_select 0, %s11, %s9
  %13 = sst [smem:[#allocation2]] %s0
  $region1: #{tpu_custom_call.1} parent=0
    #allocation3 [shape = 'u8[32768]{0}', space=vmem, size = 0x8000, scoped, tag = 'output window, operand 0']
    #allocation4 [shape = 's32[2]{0}', space=sflag, size = 0x8, scoped, tag = 'scoped memory for tpu_custom_call.1']
    #allocation5 [shape = 'u8[4096]{0}', space=vmem, size = 0x1000, scoped, tag = 'output window, operand 1']
    #allocation6 [shape = 's32[2]{0}', space=sflag, size = 0x8, scoped, tag = 'scoped memory for tpu_custom_call.1']
    %14 = vsyncpa [#allocation4], 0
    %s15 = scalar_lea.sflag [#allocation4], 1
    %16 = vsyncpa %s15, 0
    %17 = vsyncpa [#allocation6], 0
    %s18 = scalar_lea.sflag [#allocation6], 1
    %19 = vsyncpa %s18, 0
    loop: start=0, step=1, limit=4
    $region2: #{tpu_custom_call.1} parent=1 // loop_pre_header
      _
    $region3: #{tpu_custom_call.1} parent=1 // loop_header
      %s21 = sphi 0, %s25
      %p22 = scmp.ge.s32.totalorder %s21, 4
      %s29 = sphi 0, %s29
      %s31 = sphi 0, %s29
      %s32 = sphi 0, %s31
      %s46 = sphi 0, %s32
      %s52 = sphi 0, %s54
      %s55 = sphi 0, %s52
      %s56 = sphi 0, %s55
      %s72 = sphi 0, %s56
      %s76 = sphi 0, %s76
      %s78 = sphi 0, %s76
      %s79 = sphi 0, %s78
      %s93 = sphi 0, %s79
      %s97 = sphi 0, %s97
      %s99 = sphi 0, %s97
      %s100 = sphi 0, %s99
      %s114 = sphi 0, %s100
      %s118 = sphi 0, %s118
      %s120 = sphi 0, %s118
      %s121 = sphi 0, %s120
      %s135 = sphi 0, %s121
      %s139 = sphi 0, %s139
      %s141 = sphi 0, %s139
      %s142 = sphi 0, %s141
      %s156 = sphi 0, %s142
      %s162 = sphi 0, %s164
      %s165 = sphi 0, %s162
      %s166 = sphi 0, %s165
      %s182 = sphi 0, %s166
      %s188 = sphi 0, %s190
      %s191 = sphi 0, %s188
      %s192 = sphi 0, %s191
      %s208 = sphi 0, %s192
    $region4: #{tpu_custom_call.1} parent=1 // loop_header_branch
      %24 = sbr.rel (%p22) target = $region8
    $region5: #{tpu_custom_call.1} parent=1 // loop_body
      %s26 = ssub.s32 %s21, 1
      %s27 = ssub.s32 %s21, 2
      %s28 = sadd.s32 %s21, 1
      %s30 = sadd.s32 %s29, 1
      %p33 = scmp.eq.s32.totalorder %s21, 1
      %p34 = scmp.ne.s32.totalorder %s29, %s31
      %p35 = scmp.eq.s32.totalorder %s21, 0
      %p36 = por %p34, %p35
      %p37 = scmp.ne.s32.totalorder %s29, %s31
      %p38 = scmp.eq.s32.totalorder %s26, 1
      %p39 = por %p37, %p38
      %p40 = scmp.ne.s32.totalorder %s31, %s32
      %p41 = scmp.eq.s32.totalorder %s26, 0
      %p42 = por %p40, %p41
      %p43 = scmp.ne.s32.totalorder %s31, %s32
      %p44 = scmp.eq.s32.totalorder %s27, 1
      %p45 = por %p43, %p44
      %p47 = scmp.ne.s32.totalorder %s32, %s46
      %p48 = scmp.eq.s32.totalorder %s27, 0
      %p49 = por %p47, %p48
      %s50 = ssub.s32 %s21, %s28
      %p51 = scmp.eq.s32.totalorder %s50, 0
      %s53 = sadd.s32 %s52, 1
      %s54 = scalar_select %p51, %s52, %s53
      %p57 = pneg %p51
      %p58 = scmp.eq.s32.totalorder %s21, 1
      %p59 = por %p57, %p58
      %p60 = scmp.ne.s32.totalorder %s52, %s55
      %p61 = scmp.eq.s32.totalorder %s21, 0
      %p62 = por %p60, %p61
      %p63 = scmp.ne.s32.totalorder %s52, %s55
      %p64 = scmp.eq.s32.totalorder %s26, 1
      %p65 = por %p63, %p64
      %p66 = scmp.ne.s32.totalorder %s55, %s56
      %p67 = scmp.eq.s32.totalorder %s26, 0
      %p68 = por %p66, %p67
      %p69 = scmp.ne.s32.totalorder %s55, %s56
      %p70 = scmp.eq.s32.totalorder %s27, 1
      %p71 = por %p69, %p70
      %p73 = scmp.ne.s32.totalorder %s56, %s72
      %p74 = scmp.eq.s32.totalorder %s27, 0
      %p75 = por %p73, %p74
      %s77 = sadd.s32 %s76, 1
      %p80 = scmp.eq.s32.totalorder %s21, 1
      %p81 = scmp.ne.s32.totalorder %s76, %s78
      %p82 = scmp.eq.s32.totalorder %s21, 0
      %p83 = por %p81, %p82
      %p84 = scmp.ne.s32.totalorder %s76, %s78
      %p85 = scmp.eq.s32.totalorder %s26, 1
      %p86 = por %p84, %p85
      %p87 = scmp.ne.s32.totalorder %s78, %s79
      %p88 = scmp.eq.s32.totalorder %s26, 0
      %p89 = por %p87, %p88
      %p90 = scmp.ne.s32.totalorder %s78, %s79
      %p91 = scmp.eq.s32.totalorder %s27, 1
      %p92 = por %p90, %p91
      %p94 = scmp.ne.s32.totalorder %s79, %s93
      %p95 = scmp.eq.s32.totalorder %s27, 0
      %p96 = por %p94, %p95
      %s98 = sadd.s32 %s97, 1
      %p101 = scmp.eq.s32.totalorder %s21, 1
      %p102 = scmp.ne.s32.totalorder %s97, %s99
      %p103 = scmp.eq.s32.totalorder %s21, 0
      %p104 = por %p102, %p103
      %p105 = scmp.ne.s32.totalorder %s97, %s99
      %p106 = scmp.eq.s32.totalorder %s26, 1
      %p107 = por %p105, %p106
      %p108 = scmp.ne.s32.totalorder %s99, %s100
      %p109 = scmp.eq.s32.totalorder %s26, 0
      %p110 = por %p108, %p109
      %p111 = scmp.ne.s32.totalorder %s99, %s100
      %p112 = scmp.eq.s32.totalorder %s27, 1
      %p113 = por %p111, %p112
      %p115 = scmp.ne.s32.totalorder %s100, %s114
      %p116 = scmp.eq.s32.totalorder %s27, 0
      %p117 = por %p115, %p116
      %s119 = sadd.s32 %s118, 1
      %p122 = scmp.eq.s32.totalorder %s21, 1
      %p123 = scmp.ne.s32.totalorder %s118, %s120
      %p124 = scmp.eq.s32.totalorder %s21, 0
      %p125 = por %p123, %p124
      %p126 = scmp.ne.s32.totalorder %s118, %s120
      %p127 = scmp.eq.s32.totalorder %s26, 1
      %p128 = por %p126, %p127
      %p129 = scmp.ne.s32.totalorder %s120, %s121
      %p130 = scmp.eq.s32.totalorder %s26, 0
      %p131 = por %p129, %p130
      %p132 = scmp.ne.s32.totalorder %s120, %s121
      %p133 = scmp.eq.s32.totalorder %s27, 1
      %p134 = por %p132, %p133
      %p136 = scmp.ne.s32.totalorder %s121, %s135
      %p137 = scmp.eq.s32.totalorder %s27, 0
      %p138 = por %p136, %p137
      %s140 = sadd.s32 %s139, 1
      %p143 = scmp.eq.s32.totalorder %s21, 1
      %p144 = scmp.ne.s32.totalorder %s139, %s141
      %p145 = scmp.eq.s32.totalorder %s21, 0
      %p146 = por %p144, %p145
      %p147 = scmp.ne.s32.totalorder %s139, %s141
      %p148 = scmp.eq.s32.totalorder %s26, 1
      %p149 = por %p147, %p148
      %p150 = scmp.ne.s32.totalorder %s141, %s142
      %p151 = scmp.eq.s32.totalorder %s26, 0
      %p152 = por %p150, %p151
      %p153 = scmp.ne.s32.totalorder %s141, %s142
      %p154 = scmp.eq.s32.totalorder %s27, 1
      %p155 = por %p153, %p154
      %p157 = scmp.ne.s32.totalorder %s142, %s156
      %p158 = scmp.eq.s32.totalorder %s27, 0
      %p159 = por %p157, %p158
      %s160 = ssub.s32 %s21, %s28
      %p161 = scmp.eq.s32.totalorder %s160, 0
      %s163 = sadd.s32 %s162, 1
      %s164 = scalar_select %p161, %s162, %s163
      %p167 = pneg %p161
      %p168 = scmp.eq.s32.totalorder %s21, 1
      %p169 = por %p167, %p168
      %p170 = scmp.ne.s32.totalorder %s162, %s165
      %p171 = scmp.eq.s32.totalorder %s21, 0
      %p172 = por %p170, %p171
      %p173 = scmp.ne.s32.totalorder %s162, %s165
      %p174 = scmp.eq.s32.totalorder %s26, 1
      %p175 = por %p173, %p174
      %p176 = scmp.ne.s32.totalorder %s165, %s166
      %p177 = scmp.eq.s32.totalorder %s26, 0
      %p178 = por %p176, %p177
      %p179 = scmp.ne.s32.totalorder %s165, %s166
      %p180 = scmp.eq.s32.totalorder %s27, 1
      %p181 = por %p179, %p180
      %p183 = scmp.ne.s32.totalorder %s166, %s182
      %p184 = scmp.eq.s32.totalorder %s27, 0
      %p185 = por %p183, %p184
      %s186 = ssub.s32 %s21, %s28
      %p187 = scmp.eq.s32.totalorder %s186, 0
      %s189 = sadd.s32 %s188, 1
      %s190 = scalar_select %p187, %s188, %s189
      %p193 = pneg %p187
      %p194 = scmp.eq.s32.totalorder %s21, 1
      %p195 = por %p193, %p194
      %p196 = scmp.ne.s32.totalorder %s188, %s191
      %p197 = scmp.eq.s32.totalorder %s21, 0
      %p198 = por %p196, %p197
      %p199 = scmp.ne.s32.totalorder %s188, %s191
      %p200 = scmp.eq.s32.totalorder %s26, 1
      %p201 = por %p199, %p200
      %p202 = scmp.ne.s32.totalorder %s191, %s192
      %p203 = scmp.eq.s32.totalorder %s26, 0
      %p204 = por %p202, %p203
      %p205 = scmp.ne.s32.totalorder %s191, %s192
      %p206 = scmp.eq.s32.totalorder %s27, 1
      %p207 = por %p205, %p206
      %p209 = scmp.ne.s32.totalorder %s192, %s208
      %p210 = scmp.eq.s32.totalorder %s27, 0
      %p211 = por %p209, %p210
      %p212 = scmp.le.s32.totalorder 1, %s21
      %p213 = scmp.lt.s32.totalorder %s21, 3
      %p214 = pnand %p212, %p213
      %p215 = pneg %p214
      // Predicated region
      $region9: #{tpu_custom_call.1} parent=5 // pred_check
        _
      $region10: #{tpu_custom_call.1} parent=5 // pred_check_branch
        %217 = sbr.rel (%p214) target = $region12
      $region11: #{tpu_custom_call.1} parent=5 // pred_region
        %s218 = ssub.s32 %s21, 1
        // Predicated region
        $region13: #{tpu_custom_call.1} parent=11 // pred_check
          %p219 = pneg %p42
        $region14: #{tpu_custom_call.1} parent=11 // pred_check_branch
          %221 = sbr.rel (%p219) target = $region16
        $region15: #{tpu_custom_call.1} parent=11 // pred_region
          _
        $region16: #{tpu_custom_call.1} parent=11 // pred_fallthru
          _
        // Predicated region
        $region17: #{tpu_custom_call.1} parent=11 // pred_check
          %p222 = pneg %p89
        $region18: #{tpu_custom_call.1} parent=11 // pred_check_branch
          %224 = sbr.rel (%p222) target = $region20
        $region19: #{tpu_custom_call.1} parent=11 // pred_region
          _
        $region20: #{tpu_custom_call.1} parent=11 // pred_fallthru
          _
        // Predicated region
        $region21: #{tpu_custom_call.1} parent=11 // pred_check
          %p225 = pneg %p110
        $region22: #{tpu_custom_call.1} parent=11 // pred_check_branch
          %227 = sbr.rel (%p225) target = $region24
        $region23: #{tpu_custom_call.1} parent=11 // pred_region
          _
        $region24: #{tpu_custom_call.1} parent=11 // pred_fallthru
          _
        // Predicated region
        $region25: #{tpu_custom_call.1} parent=11 // pred_check
          %p228 = pneg %p131
        $region26: #{tpu_custom_call.1} parent=11 // pred_check_branch
          %230 = sbr.rel (%p228) target = $region28
        $region27: #{tpu_custom_call.1} parent=11 // pred_region
          _
        $region28: #{tpu_custom_call.1} parent=11 // pred_fallthru
          _
        // Predicated region
        $region29: #{tpu_custom_call.1} parent=11 // pred_check
          %p231 = pneg %p152
        $region30: #{tpu_custom_call.1} parent=11 // pred_check_branch
          %233 = sbr.rel (%p231) target = $region32
        $region31: #{tpu_custom_call.1} parent=11 // pred_region
          _
        $region32: #{tpu_custom_call.1} parent=11 // pred_fallthru
          _
      $region12: #{tpu_custom_call.1} parent=5 // pred_fallthru
        _
      %p234 = scmp.lt.s32.totalorder %s21, 2
      // Predicated region
      $region33: #{tpu_custom_call.1} parent=5 // pred_check
        %p235 = pneg %p234
      $region34: #{tpu_custom_call.1} parent=5 // pred_check_branch
        %237 = sbr.rel (%p235) target = $region36
      $region35: #{tpu_custom_call.1} parent=5 // pred_region
        // Predicated region
        $region37: #{tpu_custom_call.1} parent=35 // pred_check
          %p238 = pneg %p62
        $region38: #{tpu_custom_call.1} parent=35 // pred_check_branch
          %240 = sbr.rel (%p238) target = $region40
        $region39: #{tpu_custom_call.1} parent=35 // pred_region
          %s241 = smul.u32 4, %s21
          %p242 = scmp.lt.s32.totalorder %s241, 7
          %s243 = scalar_select %p242, %s241, 7
          %s244 = smul.addr %s243, 8
          %s245 = scalar_lea.vmem %s1, %s244
          %s246 = smul.u32 4, %s21
        $region40: #{tpu_custom_call.1} parent=35 // pred_fallthru
          _
      $region36: #{tpu_custom_call.1} parent=5 // pred_fallthru
        _
      %p247 = scmp.le.s32.totalorder 1, %s21
      %p248 = scmp.lt.s32.totalorder %s21, 3
      %p249 = pnand %p247, %p248
      %p250 = pneg %p249
      // Predicated region
      $region41: #{tpu_custom_call.1} parent=5 // pred_check
        _
      $region42: #{tpu_custom_call.1} parent=5 // pred_check_branch
        %252 = sbr.rel (%p249) target = $region44
      $region43: #{tpu_custom_call.1} parent=5 // pred_region
        %s253 = ssub.s32 %s21, 1
        %p254 = pneg %p42
        %p255 = pneg %p39
        %s256 = smul.u32 4, %s26
        %p257 = scmp.lt.s32.totalorder %s256, 7
        %s258 = scalar_select %p257, %s256, 7
        %s259 = smul.addr %s258, 8
        %s260 = scalar_lea.vmem %s1, %s259
        %p261 = pneg %p68
        %p262 = pneg %p65
        %p263 = pneg %p89
        %p264 = pneg %p86
        %p265 = pneg %p110
        %p266 = pneg %p107
        %p267 = pneg %p131
        %p268 = pneg %p128
        %p269 = pneg %p152
        %p270 = pneg %p149
        %p271 = pneg %p178
        %p272 = pneg %p175
        %s273 = sand.u32 %s165, 1
        %s274 = scalar_lea.sflag [#allocation4], %s273
        %s275 = sand.u32 %s165, 1
        %s276 = smul.addr %s275, 32
        %s277 = scalar_lea.vmem [#allocation3], %s276
        %p278 = pneg %p204
        %p279 = pneg %p201
        %s280 = sand.u32 %s191, 1
        %s281 = scalar_lea.sflag [#allocation6], %s280
        %s282 = sand.u32 %s191, 1
        %s283 = smul.addr %s282, 4
        %s284 = scalar_lea.vmem [#allocation5], %s283
        %s285 = smul.u32 4, %s26
        %p286 = scmp.lt.s32.totalorder %s285, 7
        %s287 = scalar_select %p286, %s285, 7
        %s288 = smul.addr %s287, 8
        %s289 = scalar_lea.vmem %s1, %s288
        %s290 = smul.u32 4, %s26
        %s291 = smul.u32 4, %s26
        %s292 = smul.u32 4, %s26
        %v293 = vld [vmem:[%s5] sm:$0xff]
        %v294 = vld [vmem:[%s289] sm:$0xff]
        %v295 = vld [vmem:[%s289 + $0x8] sm:$0xff]
        %v296 = vld [vmem:[%s289 + $0x10] sm:$0xff]
        %v297 = vld [vmem:[%s289 + $0x18] sm:$0xff]
        %299 = vset.pattern.permute.xlu0 0
        %300 = vperm.xlu0 %299, %v293
        %v301 = vpop.permute.xlu0 %300
        %v303 = vmul.f32 %v294, %v301
        %v304 = vmul.f32 %v295, %v301
        %v305 = vmul.f32 %v296, %v301
        %v306 = vmul.f32 %v297, %v301
        %307 = vset.pattern.permute.xlu0 1
        %308 = vperm.xlu0 %307, %v293
        %v309 = vpop.permute.xlu0 %308
        %v311 = vadd.f32 %v303, %v309
        %v312 = vadd.f32 %v304, %v309
        %v313 = vadd.f32 %v305, %v309
        %v314 = vadd.f32 %v306, %v309
        %s315 = sld [smem:[#allocation2]]
        %v316 = vstv %s315
        %v317 = vadd.f32 %v316, 0.0
        %v318 = vld [vmem:[%s2] sm:$0xff]
        %v319 = vld [vmem:[%s2 + $0x8] sm:$0xff]
        %v320 = vld [vmem:[%s2 + $0x10] sm:$0xff]
        %v321 = vld [vmem:[%s2 + $0x18] sm:$0xff]
        %v322 = vld [vmem:[%s2 + $0x20] sm:$0xff]
        %v323 = vld [vmem:[%s2 + $0x28] sm:$0xff]
        %v324 = vld [vmem:[%s2 + $0x30] sm:$0xff]
        %v325 = vld [vmem:[%s2 + $0x38] sm:$0xff]
        %v326 = vld [vmem:[%s3] sm:$0xff]
        %v327 = vld [vmem:[%s3 + $0x8] sm:$0xff]
        %v328 = vld [vmem:[%s3 + $0x10] sm:$0xff]
        %v329 = vld [vmem:[%s3 + $0x18] sm:$0xff]
        %v330 = vld [vmem:[%s3 + $0x20] sm:$0xff]
        %v331 = vld [vmem:[%s3 + $0x28] sm:$0xff]
        %v332 = vld [vmem:[%s3 + $0x30] sm:$0xff]
        %v333 = vld [vmem:[%s3 + $0x38] sm:$0xff]
        %v334 = vld [vmem:[%s3 + $0x40] sm:$0xff]
        %v335 = vld [vmem:[%s3 + $0x48] sm:$0xff]
        %v336 = vld [vmem:[%s4] sm:$0xff]
        %v337 = vld [vmem:[%s4 + $0x8] sm:$0xff]
        %v338 = vld [vmem:[%s4 + $0x10] sm:$0xff]
        %v339 = vld [vmem:[%s4 + $0x18] sm:$0xff]
        %v340 = vld [vmem:[%s4 + $0x20] sm:$0xff]
        %v341 = vld [vmem:[%s4 + $0x28] sm:$0xff]
        %v342 = vld [vmem:[%s4 + $0x30] sm:$0xff]
        %v343 = vld [vmem:[%s4 + $0x38] sm:$0xff]
        %345 = vset.pattern.permute.xlu0 0
        %346 = vperm.xlu0 %345, %v336
        %v347 = vpop.permute.xlu0 %346
        %350 = vset.pattern.permute.xlu0 0
        %351 = vperm.xlu0 %350, %v337
        %v352 = vpop.permute.xlu0 %351
        %355 = vset.pattern.permute.xlu0 0
        %356 = vperm.xlu0 %355, %v338
        %v357 = vpop.permute.xlu0 %356
        %360 = vset.pattern.permute.xlu0 0
        %361 = vperm.xlu0 %360, %v339
        %v362 = vpop.permute.xlu0 %361
        %365 = vset.pattern.permute.xlu0 0
        %366 = vperm.xlu0 %365, %v340
        %v367 = vpop.permute.xlu0 %366
        %370 = vset.pattern.permute.xlu0 0
        %371 = vperm.xlu0 %370, %v341
        %v372 = vpop.permute.xlu0 %371
        %375 = vset.pattern.permute.xlu0 0
        %376 = vperm.xlu0 %375, %v342
        %v377 = vpop.permute.xlu0 %376
        %380 = vset.pattern.permute.xlu0 0
        %381 = vperm.xlu0 %380, %v343
        %v382 = vpop.permute.xlu0 %381
        %vm384 = vcmask 64512
        %v386 = vsel %vm384, %v318, 0
        %v389 = vsel %vm384, %v319, 0
        %v392 = vsel %vm384, %v320, 0
        %v395 = vsel %vm384, %v321, 0
        %v398 = vsel %vm384, %v322, 0
        %v401 = vsel %vm384, %v323, 0
        %v404 = vsel %vm384, %v324, 0
        %v407 = vsel %vm384, %v325, 0
        %409 = vmatprep.subr.mxu0 %v312
        %410 = vmatpush1.msra.mxu0 %v311
        %411 = vmatprep.subr.mxu0 0.0
        %412 = vmatpush1.msra.mxu0 0.0
        %413 = vmatprep.subr.mxu0 0.0
        %414 = vmatpush1.msra.mxu0 0.0
        %415 = vmatprep.subr.mxu0 0.0
        %416 = vmatpush1.msra.mxu0 0.0
        %417 = vmatprep.subr.mxu0 0.0
        %418 = vmatpush1.msra.mxu0 0.0
        %419 = vmatprep.subr.mxu0 0.0
        %420 = vmatpush1.msra.mxu0 0.0
        %421 = vmatprep.subr.mxu0 0.0
        %422 = vmatpush1.msra.mxu0 0.0
        %423 = vmatprep.subr.mxu0 0.0
        %424 = vmatpush1.msra.mxu0 0.0
        %425 = vmatprep.subr.mxu0 0.0
        %426 = vmatpush1.msra.mxu0 0.0
        %427 = vmatprep.subr.mxu0 0.0
        %428 = vmatpush1.msra.mxu0 0.0
        %429 = vmatprep.subr.mxu0 0.0
        %430 = vmatpush1.msra.mxu0 0.0
        %431 = vmatprep.subr.mxu0 0.0
        %432 = vmatpush1.msra.mxu0 0.0
        %433 = vmatprep.subr.mxu0 0.0
        %434 = vmatpush1.msra.mxu0 0.0
        %435 = vmatprep.subr.mxu0 0.0
        %436 = vmatpush1.msra.mxu0 0.0
        %437 = vmatprep.subr.mxu0 0.0
        %438 = vmatpush1.msra.mxu0 0.0
        %439 = vmatprep.subr.mxu0 0.0
        %440 = vmatpush1.msra.mxu0 0.0
        %441 = vmatprep.subr.mxu0 0.0
        %442 = vmatpush1.msra.mxu0 0.0
        %443 = vmatprep.subr.mxu0 0.0
        %444 = vmatpush1.msra.mxu0 0.0
        %445 = vmatprep.subr.mxu0 0.0
        %446 = vmatpush1.msra.mxu0 0.0
        %447 = vmatprep.subr.mxu0 0.0
        %448 = vmatpush1.msra.mxu0 0.0
        %449 = vmatprep.subr.mxu0 0.0
        %450 = vmatpush1.msra.mxu0 0.0
        %451 = vmatprep.subr.mxu0 0.0
        %452 = vmatpush1.msra.mxu0 0.0
        %453 = vmatprep.subr.mxu0 0.0
        %454 = vmatpush1.msra.mxu0 0.0
        %455 = vmatprep.subr.mxu0 0.0
        %456 = vmatpush1.msra.mxu0 0.0
        %457 = vmatprep.subr.mxu0 0.0
        %458 = vmatpush1.msra.mxu0 0.0
        %459 = vmatprep.subr.mxu0 0.0
        %460 = vmatpush1.msra.mxu0 0.0
        %461 = vmatprep.subr.mxu0 0.0
        %462 = vmatpush1.msra.mxu0 0.0
        %463 = vmatprep.subr.mxu0 0.0
        %464 = vmatpush1.msra.mxu0 0.0
        %465 = vmatprep.subr.mxu0 0.0
        %466 = vmatpush1.msra.mxu0 0.0
        %467 = vmatprep.subr.mxu0 0.0
        %468 = vmatpush1.msra.mxu0 0.0
        %469 = vmatprep.subr.mxu0 0.0
        %470 = vmatpush1.msra.mxu0 0.0
        %471 = vmatprep.subr.mxu0 0.0
        %472 = vmatpush1.msra.mxu0 0.0
        %473 = vmatprep.mubr.f32.mxu0 0.0
        %474 = vmatmul.mubr.f32.gmra.mrb[0].mxu0 %v386
        %v475 = vpop.f32.mrb[0].mxu0
        %v476 = vadd.f32 %v347, %v475
        %v477 = vpop.f32.mrb[0].mxu0
        %v478 = vadd.f32 %v347, %v477
        %479 = vmatprep.mubr.f32.mxu0 0.0
        %480 = vmatmul.mubr.f32.gmra.mrb[0].mxu0 %v389
        %v481 = vpop.f32.mrb[0].mxu0
        %v482 = vadd.f32 %v352, %v481
        %v483 = vpop.f32.mrb[0].mxu0
        %v484 = vadd.f32 %v352, %v483
        %485 = vmatprep.mubr.f32.mxu0 0.0
        %486 = vmatmul.mubr.f32.gmra.mrb[0].mxu0 %v392
        %v487 = vpop.f32.mrb[0].mxu0
        %v488 = vadd.f32 %v357, %v487
        %v489 = vpop.f32.mrb[0].mxu0
        %v490 = vadd.f32 %v357, %v489
        %491 = vmatprep.mubr.f32.mxu0 0.0
        %492 = vmatmul.mubr.f32.gmra.mrb[0].mxu0 %v395
        %v493 = vpop.f32.mrb[0].mxu0
        %v494 = vadd.f32 %v362, %v493
        %v495 = vpop.f32.mrb[0].mxu0
        %v496 = vadd.f32 %v362, %v495
        %497 = vmatprep.mubr.f32.mxu0 0.0
        %498 = vmatmul.mubr.f32.gmra.mrb[0].mxu0 %v398
        %v499 = vpop.f32.mrb[0].mxu0
        %v500 = vadd.f32 %v367, %v499
        %v501 = vpop.f32.mrb[0].mxu0
        %v502 = vadd.f32 %v367, %v501
        %503 = vmatprep.mubr.f32.mxu0 0.0
        %504 = vmatmul.mubr.f32.gmra.mrb[0].mxu0 %v401
        %v505 = vpop.f32.mrb[0].mxu0
        %v506 = vadd.f32 %v372, %v505
        %v507 = vpop.f32.mrb[0].mxu0
        %v508 = vadd.f32 %v372, %v507
        %509 = vmatprep.mubr.f32.mxu0 0.0
        %510 = vmatmul.mubr.f32.gmra.mrb[0].mxu0 %v404
        %v511 = vpop.f32.mrb[0].mxu0
        %v512 = vadd.f32 %v377, %v511
        %v513 = vpop.f32.mrb[0].mxu0
        %v514 = vadd.f32 %v377, %v513
        %515 = vmatprep.mubr.f32.mxu0 0.0
        %516 = vmatmul.mubr.f32.gmra.mrb[0].mxu0 %v407
        %v517 = vpop.f32.mrb[0].mxu0
        %v518 = vadd.f32 %v382, %v517
        %v519 = vpop.f32.mrb[0].mxu0
        %v520 = vadd.f32 %v382, %v519
        %521 = vdwg.mxu0
        %522 = vmatprep.subr.mxu0 %v314
        %523 = vmatpush1.msra.mxu0 %v313
        %524 = vmatprep.subr.mxu0 0.0
        %525 = vmatpush1.msra.mxu0 0.0
        %526 = vmatprep.subr.mxu0 0.0
        %527 = vmatpush1.msra.mxu0 0.0
        %528 = vmatprep.subr.mxu0 0.0
        %529 = vmatpush1.msra.mxu0 0.0
        %530 = vmatprep.subr.mxu0 0.0
        %531 = vmatpush1.msra.mxu0 0.0
        %532 = vmatprep.subr.mxu0 0.0
        %533 = vmatpush1.msra.mxu0 0.0
        %534 = vmatprep.subr.mxu0 0.0
        %535 = vmatpush1.msra.mxu0 0.0
        %536 = vmatprep.subr.mxu0 0.0
        %537 = vmatpush1.msra.mxu0 0.0
        %538 = vmatprep.subr.mxu0 0.0
        %539 = vmatpush1.msra.mxu0 0.0
        %540 = vmatprep.subr.mxu0 0.0
        %541 = vmatpush1.msra.mxu0 0.0
        %542 = vmatprep.subr.mxu0 0.0
        %543 = vmatpush1.msra.mxu0 0.0
        %544 = vmatprep.subr.mxu0 0.0
        %545 = vmatpush1.msra.mxu0 0.0
        %546 = vmatprep.subr.mxu0 0.0
        %547 = vmatpush1.msra.mxu0 0.0
        %548 = vmatprep.subr.mxu0 0.0
        %549 = vmatpush1.msra.mxu0 0.0
        %550 = vmatprep.subr.mxu0 0.0
        %551 = vmatpush1.msra.mxu0 0.0
        %552 = vmatprep.subr.mxu0 0.0
        %553 = vmatpush1.msra.mxu0 0.0
        %554 = vmatprep.subr.mxu0 0.0
        %555 = vmatpush1.msra.mxu0 0.0
        %556 = vmatprep.subr.mxu0 0.0
        %557 = vmatpush1.msra.mxu0 0.0
        %558 = vmatprep.subr.mxu0 0.0
        %559 = vmatpush1.msra.mxu0 0.0
        %560 = vmatprep.subr.mxu0 0.0
        %561 = vmatpush1.msra.mxu0 0.0
        %562 = vmatprep.subr.mxu0 0.0
        %563 = vmatpush1.msra.mxu0 0.0
        %564 = vmatprep.subr.mxu0 0.0
        %565 = vmatpush1.msra.mxu0 0.0
        %566 = vmatprep.subr.mxu0 0.0
        %567 = vmatpush1.msra.mxu0 0.0
        %568 = vmatprep.subr.mxu0 0.0
        %569 = vmatpush1.msra.mxu0 0.0
        %570 = vmatprep.subr.mxu0 0.0
        %571 = vmatpush1.msra.mxu0 0.0
        %572 = vmatprep.subr.mxu0 0.0
        %573 = vmatpush1.msra.mxu0 0.0
        %574 = vmatprep.subr.mxu0 0.0
        %575 = vmatpush1.msra.mxu0 0.0
        %576 = vmatprep.subr.mxu0 0.0
        %577 = vmatpush1.msra.mxu0 0.0
        %578 = vmatprep.subr.mxu0 0.0
        %579 = vmatpush1.msra.mxu0 0.0
        %580 = vmatprep.subr.mxu0 0.0
        %581 = vmatpush1.msra.mxu0 0.0
        %582 = vmatprep.subr.mxu0 0.0
        %583 = vmatpush1.msra.mxu0 0.0
        %584 = vmatprep.subr.mxu0 0.0
        %585 = vmatpush1.msra.mxu0 0.0
        %586 = vmatprep.mubr.f32.mxu0 0.0
        %587 = vmatmul.mubr.f32.gmra.mrb[0].mxu0 %v386
        %v588 = vpop.f32.mrb[0].mxu0
        %v589 = vadd.f32 %v347, %v588
        %v590 = vpop.f32.mrb[0].mxu0
        %v591 = vadd.f32 %v347, %v590
        %592 = vmatprep.mubr.f32.mxu0 0.0
        %593 = vmatmul.mubr.f32.gmra.mrb[0].mxu0 %v389
        %v594 = vpop.f32.mrb[0].mxu0
        %v595 = vadd.f32 %v352, %v594
        %v596 = vpop.f32.mrb[0].mxu0
        %v597 = vadd.f32 %v352, %v596
        %598 = vmatprep.mubr.f32.mxu0 0.0
        %599 = vmatmul.mubr.f32.gmra.mrb[0].mxu0 %v392
        %v600 = vpop.f32.mrb[0].mxu0
        %v601 = vadd.f32 %v357, %v600
        %v602 = vpop.f32.mrb[0].mxu0
        %v603 = vadd.f32 %v357, %v602
        %604 = vmatprep.mubr.f32.mxu0 0.0
        %605 = vmatmul.mubr.f32.gmra.mrb[0].mxu0 %v395
        %v606 = vpop.f32.mrb[0].mxu0
        %v607 = vadd.f32 %v362, %v606
        %v608 = vpop.f32.mrb[0].mxu0
        %v609 = vadd.f32 %v362, %v608
        %610 = vmatprep.mubr.f32.mxu0 0.0
        %611 = vmatmul.mubr.f32.gmra.mrb[0].mxu0 %v398
        %v612 = vpop.f32.mrb[0].mxu0
        %v613 = vadd.f32 %v367, %v612
        %v614 = vpop.f32.mrb[0].mxu0
        %v615 = vadd.f32 %v367, %v614
        %616 = vmatprep.mubr.f32.mxu0 0.0
        %617 = vmatmul.mubr.f32.gmra.mrb[0].mxu0 %v401
        %v618 = vpop.f32.mrb[0].mxu0
        %v619 = vadd.f32 %v372, %v618
        %v620 = vpop.f32.mrb[0].mxu0
        %v621 = vadd.f32 %v372, %v620
        %622 = vmatprep.mubr.f32.mxu0 0.0
        %623 = vmatmul.mubr.f32.gmra.mrb[0].mxu0 %v404
        %v624 = vpop.f32.mrb[0].mxu0
        %v625 = vadd.f32 %v377, %v624
        %v626 = vpop.f32.mrb[0].mxu0
        %v627 = vadd.f32 %v377, %v626
        %628 = vmatprep.mubr.f32.mxu0 0.0
        %629 = vmatmul.mubr.f32.gmra.mrb[0].mxu0 %v407
        %v630 = vpop.f32.mrb[0].mxu0
        %v631 = vadd.f32 %v382, %v630
        %v632 = vpop.f32.mrb[0].mxu0
        %v633 = vadd.f32 %v382, %v632
        %634 = vdwg.mxu0
        %v635 = vmax.f32 %v476, 0.0
        %v636 = vmax.f32 %v478, 0.0
        %v637 = vmax.f32 %v589, 0.0
        %v638 = vmax.f32 %v591, 0.0
        %v639 = vmax.f32 %v482, 0.0
        %v640 = vmax.f32 %v484, 0.0
        %v641 = vmax.f32 %v595, 0.0
        %v642 = vmax.f32 %v597, 0.0
        %v643 = vmax.f32 %v488, 0.0
        %v644 = vmax.f32 %v490, 0.0
        %v645 = vmax.f32 %v601, 0.0
        %v646 = vmax.f32 %v603, 0.0
        %v647 = vmax.f32 %v494, 0.0
        %v648 = vmax.f32 %v496, 0.0
        %v649 = vmax.f32 %v607, 0.0
        %v650 = vmax.f32 %v609, 0.0
        %v651 = vmax.f32 %v500, 0.0
        %v652 = vmax.f32 %v502, 0.0
        %v653 = vmax.f32 %v613, 0.0
        %v654 = vmax.f32 %v615, 0.0
        %v655 = vmax.f32 %v506, 0.0
        %v656 = vmax.f32 %v508, 0.0
        %v657 = vmax.f32 %v619, 0.0
        %v658 = vmax.f32 %v621, 0.0
        %v659 = vmax.f32 %v512, 0.0
        %v660 = vmax.f32 %v514, 0.0
        %v661 = vmax.f32 %v625, 0.0
        %v662 = vmax.f32 %v627, 0.0
        %v663 = vmax.f32 %v518, 0.0
        %v664 = vmax.f32 %v520, 0.0
        %v665 = vmax.f32 %v631, 0.0
        %v666 = vmax.f32 %v633, 0.0
        %667 = vset.pattern.permute.xlu0 1
        %668 = vperm.xlu0 %667, %v336
        %v669 = vpop.permute.xlu0 %668
        %671 = vset.pattern.permute.xlu0 1
        %672 = vperm.xlu0 %671, %v337
        %v673 = vpop.permute.xlu0 %672
        %675 = vset.pattern.permute.xlu0 1
        %676 = vperm.xlu0 %675, %v338
        %v677 = vpop.permute.xlu0 %676
        %679 = vset.pattern.permute.xlu0 1
        %680 = vperm.xlu0 %679, %v339
        %v681 = vpop.permute.xlu0 %680
        %683 = vset.pattern.permute.xlu0 1
        %684 = vperm.xlu0 %683, %v340
        %v685 = vpop.permute.xlu0 %684
        %687 = vset.pattern.permute.xlu0 1
        %688 = vperm.xlu0 %687, %v341
        %v689 = vpop.permute.xlu0 %688
        %691 = vset.pattern.permute.xlu0 1
        %692 = vperm.xlu0 %691, %v342
        %v693 = vpop.permute.xlu0 %692
        %695 = vset.pattern.permute.xlu0 1
        %696 = vperm.xlu0 %695, %v343
        %v697 = vpop.permute.xlu0 %696
        %vm699 = vcmask 523264
        %v701 = vsel %vm699, %v326, 0
        %v704 = vsel %vm699, %v327, 0
        %v707 = vsel %vm699, %v328, 0
        %v710 = vsel %vm699, %v329, 0
        %v713 = vsel %vm699, %v330, 0
        %v716 = vsel %vm699, %v331, 0
        %v719 = vsel %vm699, %v332, 0
        %v722 = vsel %vm699, %v333, 0
        %724 = vmatprep.subr.mxu0 %v636
        %725 = vmatpush1.msra.mxu0 %v635
        %726 = vmatprep.subr.mxu0 %v640
        %727 = vmatpush1.msra.mxu0 %v639
        %728 = vmatprep.subr.mxu0 %v644
        %729 = vmatpush1.msra.mxu0 %v643
        %730 = vmatprep.subr.mxu0 %v648
        %731 = vmatpush1.msra.mxu0 %v647
        %732 = vmatprep.subr.mxu0 %v652
        %733 = vmatpush1.msra.mxu0 %v651
        %734 = vmatprep.subr.mxu0 %v656
        %735 = vmatpush1.msra.mxu0 %v655
        %736 = vmatprep.subr.mxu0 %v660
        %737 = vmatpush1.msra.mxu0 %v659
        %738 = vmatprep.subr.mxu0 %v664
        %739 = vmatpush1.msra.mxu0 %v663
        %740 = vmatprep.subr.mxu0 0.0
        %741 = vmatpush1.msra.mxu0 0.0
        %742 = vmatprep.subr.mxu0 0.0
        %743 = vmatpush1.msra.mxu0 0.0
        %744 = vmatprep.subr.mxu0 0.0
        %745 = vmatpush1.msra.mxu0 0.0
        %746 = vmatprep.subr.mxu0 0.0
        %747 = vmatpush1.msra.mxu0 0.0
        %748 = vmatprep.subr.mxu0 0.0
        %749 = vmatpush1.msra.mxu0 0.0
        %750 = vmatprep.subr.mxu0 0.0
        %751 = vmatpush1.msra.mxu0 0.0
        %752 = vmatprep.subr.mxu0 0.0
        %753 = vmatpush1.msra.mxu0 0.0
        %754 = vmatprep.subr.mxu0 0.0
        %755 = vmatpush1.msra.mxu0 0.0
        %756 = vmatprep.subr.mxu0 0.0
        %757 = vmatpush1.msra.mxu0 0.0
        %758 = vmatprep.subr.mxu0 0.0
        %759 = vmatpush1.msra.mxu0 0.0
        %760 = vmatprep.subr.mxu0 0.0
        %761 = vmatpush1.msra.mxu0 0.0
        %762 = vmatprep.subr.mxu0 0.0
        %763 = vmatpush1.msra.mxu0 0.0
        %764 = vmatprep.subr.mxu0 0.0
        %765 = vmatpush1.msra.mxu0 0.0
        %766 = vmatprep.subr.mxu0 0.0
        %767 = vmatpush1.msra.mxu0 0.0
        %768 = vmatprep.subr.mxu0 0.0
        %769 = vmatpush1.msra.mxu0 0.0
        %770 = vmatprep.subr.mxu0 0.0
        %771 = vmatpush1.msra.mxu0 0.0
        %772 = vmatprep.subr.mxu0 0.0
        %773 = vmatpush1.msra.mxu0 0.0
        %774 = vmatprep.subr.mxu0 0.0
        %775 = vmatpush1.msra.mxu0 0.0
        %776 = vmatprep.subr.mxu0 0.0
        %777 = vmatpush1.msra.mxu0 0.0
        %778 = vmatprep.subr.mxu0 0.0
        %779 = vmatpush1.msra.mxu0 0.0
        %780 = vmatprep.subr.mxu0 0.0
        %781 = vmatpush1.msra.mxu0 0.0
        %782 = vmatprep.subr.mxu0 0.0
        %783 = vmatpush1.msra.mxu0 0.0
        %784 = vmatprep.subr.mxu0 0.0
        %785 = vmatpush1.msra.mxu0 0.0
        %786 = vmatprep.subr.mxu0 0.0
        %787 = vmatpush1.msra.mxu0 0.0
        %788 = vmatprep.mubr.f32.mxu0 0.0
        %789 = vmatmul.mubr.f32.gmra.mrb[0].mxu0 %v701
        %v790 = vpop.f32.mrb[0].mxu0
        %v791 = vadd.f32 %v669, %v790
        %v792 = vpop.f32.mrb[0].mxu0
        %v793 = vadd.f32 %v669, %v792
        %794 = vmatprep.mubr.f32.mxu0 0.0
        %795 = vmatmul.mubr.f32.gmra.mrb[0].mxu0 %v704
        %v796 = vpop.f32.mrb[0].mxu0
        %v797 = vadd.f32 %v673, %v796
        %v798 = vpop.f32.mrb[0].mxu0
        %v799 = vadd.f32 %v673, %v798
        %800 = vmatprep.mubr.f32.mxu0 0.0
        %801 = vmatmul.mubr.f32.gmra.mrb[0].mxu0 %v707
        %v802 = vpop.f32.mrb[0].mxu0
        %v803 = vadd.f32 %v677, %v802
        %v804 = vpop.f32.mrb[0].mxu0
        %v805 = vadd.f32 %v677, %v804
        %806 = vmatprep.mubr.f32.mxu0 0.0
        %807 = vmatmul.mubr.f32.gmra.mrb[0].mxu0 %v710
        %v808 = vpop.f32.mrb[0].mxu0
        %v809 = vadd.f32 %v681, %v808
        %v810 = vpop.f32.mrb[0].mxu0
        %v811 = vadd.f32 %v681, %v810
        %812 = vmatprep.mubr.f32.mxu0 0.0
        %813 = vmatmul.mubr.f32.gmra.mrb[0].mxu0 %v713
        %v814 = vpop.f32.mrb[0].mxu0
        %v815 = vadd.f32 %v685, %v814
        %v816 = vpop.f32.mrb[0].mxu0
        %v817 = vadd.f32 %v685, %v816
        %818 = vmatprep.mubr.f32.mxu0 0.0
        %819 = vmatmul.mubr.f32.gmra.mrb[0].mxu0 %v716
        %v820 = vpop.f32.mrb[0].mxu0
        %v821 = vadd.f32 %v689, %v820
        %v822 = vpop.f32.mrb[0].mxu0
        %v823 = vadd.f32 %v689, %v822
        %824 = vmatprep.mubr.f32.mxu0 0.0
        %825 = vmatmul.mubr.f32.gmra.mrb[0].mxu0 %v719
        %v826 = vpop.f32.mrb[0].mxu0
        %v827 = vadd.f32 %v693, %v826
        %v828 = vpop.f32.mrb[0].mxu0
        %v829 = vadd.f32 %v693, %v828
        %830 = vmatprep.mubr.f32.mxu0 0.0
        %831 = vmatmul.mubr.f32.gmra.mrb[0].mxu0 %v722
        %v832 = vpop.f32.mrb[0].mxu0
        %v833 = vadd.f32 %v697, %v832
        %v834 = vpop.f32.mrb[0].mxu0
        %v835 = vadd.f32 %v697, %v834
        %836 = vdwg.mxu0
        %837 = vmatprep.subr.mxu0 %v638
        %838 = vmatpush1.msra.mxu0 %v637
        %839 = vmatprep.subr.mxu0 %v642
        %840 = vmatpush1.msra.mxu0 %v641
        %841 = vmatprep.subr.mxu0 %v646
        %842 = vmatpush1.msra.mxu0 %v645
        %843 = vmatprep.subr.mxu0 %v650
        %844 = vmatpush1.msra.mxu0 %v649
        %845 = vmatprep.subr.mxu0 %v654
        %846 = vmatpush1.msra.mxu0 %v653
        %847 = vmatprep.subr.mxu0 %v658
        %848 = vmatpush1.msra.mxu0 %v657
        %849 = vmatprep.subr.mxu0 %v662
        %850 = vmatpush1.msra.mxu0 %v661
        %851 = vmatprep.subr.mxu0 %v666
        %852 = vmatpush1.msra.mxu0 %v665
        %853 = vmatprep.subr.mxu0 0.0
        %854 = vmatpush1.msra.mxu0 0.0
        %855 = vmatprep.subr.mxu0 0.0
        %856 = vmatpush1.msra.mxu0 0.0
        %857 = vmatprep.subr.mxu0 0.0
        %858 = vmatpush1.msra.mxu0 0.0
        %859 = vmatprep.subr.mxu0 0.0
        %860 = vmatpush1.msra.mxu0 0.0
        %861 = vmatprep.subr.mxu0 0.0
        %862 = vmatpush1.msra.mxu0 0.0
        %863 = vmatprep.subr.mxu0 0.0
        %864 = vmatpush1.msra.mxu0 0.0
        %865 = vmatprep.subr.mxu0 0.0
        %866 = vmatpush1.msra.mxu0 0.0
        %867 = vmatprep.subr.mxu0 0.0
        %868 = vmatpush1.msra.mxu0 0.0
        %869 = vmatprep.subr.mxu0 0.0
        %870 = vmatpush1.msra.mxu0 0.0
        %871 = vmatprep.subr.mxu0 0.0
        %872 = vmatpush1.msra.mxu0 0.0
        %873 = vmatprep.subr.mxu0 0.0
        %874 = vmatpush1.msra.mxu0 0.0
        %875 = vmatprep.subr.mxu0 0.0
        %876 = vmatpush1.msra.mxu0 0.0
        %877 = vmatprep.subr.mxu0 0.0
        %878 = vmatpush1.msra.mxu0 0.0
        %879 = vmatprep.subr.mxu0 0.0
        %880 = vmatpush1.msra.mxu0 0.0
        %881 = vmatprep.subr.mxu0 0.0
        %882 = vmatpush1.msra.mxu0 0.0
        %883 = vmatprep.subr.mxu0 0.0
        %884 = vmatpush1.msra.mxu0 0.0
        %885 = vmatprep.subr.mxu0 0.0
        %886 = vmatpush1.msra.mxu0 0.0
        %887 = vmatprep.subr.mxu0 0.0
        %888 = vmatpush1.msra.mxu0 0.0
        %889 = vmatprep.subr.mxu0 0.0
        %890 = vmatpush1.msra.mxu0 0.0
        %891 = vmatprep.subr.mxu0 0.0
        %892 = vmatpush1.msra.mxu0 0.0
        %893 = vmatprep.subr.mxu0 0.0
        %894 = vmatpush1.msra.mxu0 0.0
        %895 = vmatprep.subr.mxu0 0.0
        %896 = vmatpush1.msra.mxu0 0.0
        %897 = vmatprep.subr.mxu0 0.0
        %898 = vmatpush1.msra.mxu0 0.0
        %899 = vmatprep.subr.mxu0 0.0
        %900 = vmatpush1.msra.mxu0 0.0
        %901 = vmatprep.mubr.f32.mxu0 0.0
        %902 = vmatmul.mubr.f32.gmra.mrb[0].mxu0 %v701
        %v903 = vpop.f32.mrb[0].mxu0
        %v904 = vadd.f32 %v669, %v903
        %v905 = vpop.f32.mrb[0].mxu0
        %v906 = vadd.f32 %v669, %v905
        %907 = vmatprep.mubr.f32.mxu0 0.0
        %908 = vmatmul.mubr.f32.gmra.mrb[0].mxu0 %v704
        %v909 = vpop.f32.mrb[0].mxu0
        %v910 = vadd.f32 %v673, %v909
        %v911 = vpop.f32.mrb[0].mxu0
        %v912 = vadd.f32 %v673, %v911
        %913 = vmatprep.mubr.f32.mxu0 0.0
        %914 = vmatmul.mubr.f32.gmra.mrb[0].mxu0 %v707
        %v915 = vpop.f32.mrb[0].mxu0
        %v916 = vadd.f32 %v677, %v915
        %v917 = vpop.f32.mrb[0].mxu0
        %v918 = vadd.f32 %v677, %v917
        %919 = vmatprep.mubr.f32.mxu0 0.0
        %920 = vmatmul.mubr.f32.gmra.mrb[0].mxu0 %v710
        %v921 = vpop.f32.mrb[0].mxu0
        %v922 = vadd.f32 %v681, %v921
        %v923 = vpop.f32.mrb[0].mxu0
        %v924 = vadd.f32 %v681, %v923
        %925 = vmatprep.mubr.f32.mxu0 0.0
        %926 = vmatmul.mubr.f32.gmra.mrb[0].mxu0 %v713
        %v927 = vpop.f32.mrb[0].mxu0
        %v928 = vadd.f32 %v685, %v927
        %v929 = vpop.f32.mrb[0].mxu0
        %v930 = vadd.f32 %v685, %v929
        %931 = vmatprep.mubr.f32.mxu0 0.0
        %932 = vmatmul.mubr.f32.gmra.mrb[0].mxu0 %v716
        %v933 = vpop.f32.mrb[0].mxu0
        %v934 = vadd.f32 %v689, %v933
        %v935 = vpop.f32.mrb[0].mxu0
        %v936 = vadd.f32 %v689, %v935
        %937 = vmatprep.mubr.f32.mxu0 0.0
        %938 = vmatmul.mubr.f32.gmra.mrb[0].mxu0 %v719
        %v939 = vpop.f32.mrb[0].mxu0
        %v940 = vadd.f32 %v693, %v939
        %v941 = vpop.f32.mrb[0].mxu0
        %v942 = vadd.f32 %v693, %v941
        %943 = vmatprep.mubr.f32.mxu0 0.0
        %944 = vmatmul.mubr.f32.gmra.mrb[0].mxu0 %v722
        %v945 = vpop.f32.mrb[0].mxu0
        %v946 = vadd.f32 %v697, %v945
        %v947 = vpop.f32.mrb[0].mxu0
        %v948 = vadd.f32 %v697, %v947
        %949 = vdwg.mxu0
        %v950 = vmax.f32 %v791, 0.0
        %v951 = vmax.f32 %v793, 0.0
        %v952 = vmax.f32 %v904, 0.0
        %v953 = vmax.f32 %v906, 0.0
        %v954 = vmax.f32 %v797, 0.0
        %v955 = vmax.f32 %v799, 0.0
        %v956 = vmax.f32 %v910, 0.0
        %v957 = vmax.f32 %v912, 0.0
        %v958 = vmax.f32 %v803, 0.0
        %v959 = vmax.f32 %v805, 0.0
        %v960 = vmax.f32 %v916, 0.0
        %v961 = vmax.f32 %v918, 0.0
        %v962 = vmax.f32 %v809, 0.0
        %v963 = vmax.f32 %v811, 0.0
        %v964 = vmax.f32 %v922, 0.0
        %v965 = vmax.f32 %v924, 0.0
        %v966 = vmax.f32 %v815, 0.0
        %v967 = vmax.f32 %v817, 0.0
        %v968 = vmax.f32 %v928, 0.0
        %v969 = vmax.f32 %v930, 0.0
        %v970 = vmax.f32 %v821, 0.0
        %v971 = vmax.f32 %v823, 0.0
        %v972 = vmax.f32 %v934, 0.0
        %v973 = vmax.f32 %v936, 0.0
        %v974 = vmax.f32 %v827, 0.0
        %v975 = vmax.f32 %v829, 0.0
        %v976 = vmax.f32 %v940, 0.0
        %v977 = vmax.f32 %v942, 0.0
        %v978 = vmax.f32 %v833, 0.0
        %v979 = vmax.f32 %v835, 0.0
        %v980 = vmax.f32 %v946, 0.0
        %v981 = vmax.f32 %v948, 0.0
        %982 = vset.pattern.permute.xlu0 2
        %983 = vperm.xlu0 %982, %v336
        %v984 = vpop.permute.xlu0 %983
        %986 = vset.pattern.permute.xlu0 2
        %987 = vperm.xlu0 %986, %v337
        %v988 = vpop.permute.xlu0 %987
        %v991 = vsel %vm699, %v334, 0
        %v994 = vsel %vm699, %v335, 0
        %996 = vmatprep.subr.mxu0 %v951
        %997 = vmatpush1.msra.mxu0 %v950
        %998 = vmatprep.subr.mxu0 %v955
        %999 = vmatpush1.msra.mxu0 %v954
        %1000 = vmatprep.subr.mxu0 %v959
        %1001 = vmatpush1.msra.mxu0 %v958
        %1002 = vmatprep.subr.mxu0 %v963
        %1003 = vmatpush1.msra.mxu0 %v962
        %1004 = vmatprep.subr.mxu0 %v967
        %1005 = vmatpush1.msra.mxu0 %v966
        %1006 = vmatprep.subr.mxu0 %v971
        %1007 = vmatpush1.msra.mxu0 %v970
        %1008 = vmatprep.subr.mxu0 %v975
        %1009 = vmatpush1.msra.mxu0 %v974
        %1010 = vmatprep.subr.mxu0 %v979
        %1011 = vmatpush1.msra.mxu0 %v978
        %1012 = vmatprep.subr.mxu0 0.0
        %1013 = vmatpush1.msra.mxu0 0.0
        %1014 = vmatprep.subr.mxu0 0.0
        %1015 = vmatpush1.msra.mxu0 0.0
        %1016 = vmatprep.subr.mxu0 0.0
        %1017 = vmatpush1.msra.mxu0 0.0
        %1018 = vmatprep.subr.mxu0 0.0
        %1019 = vmatpush1.msra.mxu0 0.0
        %1020 = vmatprep.subr.mxu0 0.0
        %1021 = vmatpush1.msra.mxu0 0.0
        %1022 = vmatprep.subr.mxu0 0.0
        %1023 = vmatpush1.msra.mxu0 0.0
        %1024 = vmatprep.subr.mxu0 0.0
        %1025 = vmatpush1.msra.mxu0 0.0
        %1026 = vmatprep.subr.mxu0 0.0
        %1027 = vmatpush1.msra.mxu0 0.0
        %1028 = vmatprep.subr.mxu0 0.0
        %1029 = vmatpush1.msra.mxu0 0.0
        %1030 = vmatprep.subr.mxu0 0.0
        %1031 = vmatpush1.msra.mxu0 0.0
        %1032 = vmatprep.subr.mxu0 0.0
        %1033 = vmatpush1.msra.mxu0 0.0
        %1034 = vmatprep.subr.mxu0 0.0
        %1035 = vmatpush1.msra.mxu0 0.0
        %1036 = vmatprep.subr.mxu0 0.0
        %1037 = vmatpush1.msra.mxu0 0.0
        %1038 = vmatprep.subr.mxu0 0.0
        %1039 = vmatpush1.msra.mxu0 0.0
        %1040 = vmatprep.subr.mxu0 0.0
        %1041 = vmatpush1.msra.mxu0 0.0
        %1042 = vmatprep.subr.mxu0 0.0
        %1043 = vmatpush1.msra.mxu0 0.0
        %1044 = vmatprep.subr.mxu0 0.0
        %1045 = vmatpush1.msra.mxu0 0.0
        %1046 = vmatprep.subr.mxu0 0.0
        %1047 = vmatpush1.msra.mxu0 0.0
        %1048 = vmatprep.subr.mxu0 0.0
        %1049 = vmatpush1.msra.mxu0 0.0
        %1050 = vmatprep.subr.mxu0 0.0
        %1051 = vmatpush1.msra.mxu0 0.0
        %1052 = vmatprep.subr.mxu0 0.0
        %1053 = vmatpush1.msra.mxu0 0.0
        %1054 = vmatprep.subr.mxu0 0.0
        %1055 = vmatpush1.msra.mxu0 0.0
        %1056 = vmatprep.subr.mxu0 0.0
        %1057 = vmatpush1.msra.mxu0 0.0
        %1058 = vmatprep.subr.mxu0 0.0
        %1059 = vmatpush1.msra.mxu0 0.0
        %1060 = vmatprep.mubr.f32.mxu0 0.0
        %1061 = vmatmul.mubr.f32.gmra.mrb[0].mxu0 %v991
        %v1062 = vpop.f32.mrb[0].mxu0
        %v1063 = vadd.f32 %v984, %v1062
        %v1064 = vpop.f32.mrb[0].mxu0
        %v1065 = vadd.f32 %v984, %v1064
        %1066 = vmatprep.mubr.f32.mxu0 0.0
        %1067 = vmatmul.mubr.f32.gmra.mrb[0].mxu0 %v994
        %v1068 = vpop.f32.mrb[0].mxu0
        %v1069 = vadd.f32 %v988, %v1068
        %v1070 = vpop.f32.mrb[0].mxu0
        %v1071 = vadd.f32 %v988, %v1070
        %1072 = vdwg.mxu0
        %1073 = vmatprep.subr.mxu0 %v953
        %1074 = vmatpush1.msra.mxu0 %v952
        %1075 = vmatprep.subr.mxu0 %v957
        %1076 = vmatpush1.msra.mxu0 %v956
        %1077 = vmatprep.subr.mxu0 %v961
        %1078 = vmatpush1.msra.mxu0 %v960
        %1079 = vmatprep.subr.mxu0 %v965
        %1080 = vmatpush1.msra.mxu0 %v964
        %1081 = vmatprep.subr.mxu0 %v969
        %1082 = vmatpush1.msra.mxu0 %v968
        %1083 = vmatprep.subr.mxu0 %v973
        %1084 = vmatpush1.msra.mxu0 %v972
        %1085 = vmatprep.subr.mxu0 %v977
        %1086 = vmatpush1.msra.mxu0 %v976
        %1087 = vmatprep.subr.mxu0 %v981
        %1088 = vmatpush1.msra.mxu0 %v980
        %1089 = vmatprep.subr.mxu0 0.0
        %1090 = vmatpush1.msra.mxu0 0.0
        %1091 = vmatprep.subr.mxu0 0.0
        %1092 = vmatpush1.msra.mxu0 0.0
        %1093 = vmatprep.subr.mxu0 0.0
        %1094 = vmatpush1.msra.mxu0 0.0
        %1095 = vmatprep.subr.mxu0 0.0
        %1096 = vmatpush1.msra.mxu0 0.0
        %1097 = vmatprep.subr.mxu0 0.0
        %1098 = vmatpush1.msra.mxu0 0.0
        %1099 = vmatprep.subr.mxu0 0.0
        %1100 = vmatpush1.msra.mxu0 0.0
        %1101 = vmatprep.subr.mxu0 0.0
        %1102 = vmatpush1.msra.mxu0 0.0
        %1103 = vmatprep.subr.mxu0 0.0
        %1104 = vmatpush1.msra.mxu0 0.0
        %1105 = vmatprep.subr.mxu0 0.0
        %1106 = vmatpush1.msra.mxu0 0.0
        %1107 = vmatprep.subr.mxu0 0.0
        %1108 = vmatpush1.msra.mxu0 0.0
        %1109 = vmatprep.subr.mxu0 0.0
        %1110 = vmatpush1.msra.mxu0 0.0
        %1111 = vmatprep.subr.mxu0 0.0
        %1112 = vmatpush1.msra.mxu0 0.0
        %1113 = vmatprep.subr.mxu0 0.0
        %1114 = vmatpush1.msra.mxu0 0.0
        %1115 = vmatprep.subr.mxu0 0.0
        %1116 = vmatpush1.msra.mxu0 0.0
        %1117 = vmatprep.subr.mxu0 0.0
        %1118 = vmatpush1.msra.mxu0 0.0
        %1119 = vmatprep.subr.mxu0 0.0
        %1120 = vmatpush1.msra.mxu0 0.0
        %1121 = vmatprep.subr.mxu0 0.0
        %1122 = vmatpush1.msra.mxu0 0.0
        %1123 = vmatprep.subr.mxu0 0.0
        %1124 = vmatpush1.msra.mxu0 0.0
        %1125 = vmatprep.subr.mxu0 0.0
        %1126 = vmatpush1.msra.mxu0 0.0
        %1127 = vmatprep.subr.mxu0 0.0
        %1128 = vmatpush1.msra.mxu0 0.0
        %1129 = vmatprep.subr.mxu0 0.0
        %1130 = vmatpush1.msra.mxu0 0.0
        %1131 = vmatprep.subr.mxu0 0.0
        %1132 = vmatpush1.msra.mxu0 0.0
        %1133 = vmatprep.subr.mxu0 0.0
        %1134 = vmatpush1.msra.mxu0 0.0
        %1135 = vmatprep.subr.mxu0 0.0
        %1136 = vmatpush1.msra.mxu0 0.0
        %1137 = vmatprep.mubr.f32.mxu0 0.0
        %1138 = vmatmul.mubr.f32.gmra.mrb[0].mxu0 %v991
        %v1139 = vpop.f32.mrb[0].mxu0
        %v1140 = vadd.f32 %v984, %v1139
        %v1141 = vpop.f32.mrb[0].mxu0
        %v1142 = vadd.f32 %v984, %v1141
        %1143 = vmatprep.mubr.f32.mxu0 0.0
        %1144 = vmatmul.mubr.f32.gmra.mrb[0].mxu0 %v994
        %v1145 = vpop.f32.mrb[0].mxu0
        %v1146 = vadd.f32 %v988, %v1145
        %v1147 = vpop.f32.mrb[0].mxu0
        %v1148 = vadd.f32 %v988, %v1147
        %1149 = vdwg.mxu0
        %v1150 = vmax.f32 %v1063, 0.0
        %v1151 = vmax.f32 %v1065, 0.0
        %v1152 = vmax.f32 %v1140, 0.0
        %v1153 = vmax.f32 %v1142, 0.0
        %1154 = vset.pattern.permute.xlu0 2
        %1155 = vperm.xlu0 %1154, %v293
        %v1156 = vpop.permute.xlu0 %1155
        %v1158 = vmul.f32 %v1150, %v1156
        %v1159 = vmul.f32 %v1151, %v1156
        %v1160 = vmul.f32 %v1152, %v1156
        %v1161 = vmul.f32 %v1153, %v1156
        %1162 = vset.pattern.permute.xlu0 3
        %1163 = vperm.xlu0 %1162, %v293
        %v1164 = vpop.permute.xlu0 %1163
        %v1166 = vmul.f32 %v1164, %v311
        %v1167 = vmul.f32 %v1164, %v312
        %v1168 = vmul.f32 %v1164, %v313
        %v1169 = vmul.f32 %v1164, %v314
        %v1170 = vmul.f32 %v1158, 1.442695
        %v1171 = vpow.pop %v1170
        %v1172 = vmul.f32 %v1159, 1.442695
        %v1173 = vpow.pop %v1172
        %v1174 = vmul.f32 %v1160, 1.442695
        %v1175 = vpow.pop %v1174
        %v1176 = vmul.f32 %v1161, 1.442695
        %v1177 = vpow.pop %v1176
        %v1178 = vmul.f32 %v311, %v1171
        %v1179 = vmul.f32 %v312, %v1173
        %v1180 = vmul.f32 %v313, %v1175
        %v1181 = vmul.f32 %v314, %v1177
        %v1182 = vadd.f32 %v1178, %v1069
        %v1183 = vadd.f32 %v1179, %v1071
        %v1184 = vadd.f32 %v1180, %v1146
        %v1185 = vadd.f32 %v1181, %v1148
        %1186 = vset.pattern.permute.xlu0 4
        %1187 = vperm.xlu0 %1186, %v293
        %v1188 = vpop.permute.xlu0 %1187
        %v1190 = vmul.f32 %v1188, %v1182
        %v1191 = vmul.f32 %v1188, %v1183
        %v1192 = vmul.f32 %v1188, %v1184
        %v1193 = vmul.f32 %v1188, %v1185
        %v1194 = vadd.f32 %v1166, %v1190
        %v1195 = vadd.f32 %v1167, %v1191
        %v1196 = vadd.f32 %v1168, %v1192
        %v1197 = vadd.f32 %v1169, %v1193
        %v1198 = vmul.f32 %v1188, %v1158
        %v1199 = vmul.f32 %v1188, %v1159
        %v1200 = vmul.f32 %v1188, %v1160
        %v1201 = vmul.f32 %v1188, %v1161
        %v1202 = vrot.slane %v1198, 4
        %v1203 = vadd.f32 %v1198, %v1202
        %v1204 = vrot.slane %v1203, 2
        %v1205 = vadd.f32 %v1203, %v1204
        %v1206 = vrot.slane %v1205, 1
        %v1207 = vadd.f32 %v1205, %v1206
        %v1208 = vrot.slane %v1199, 4
        %v1209 = vadd.f32 %v1199, %v1208
        %v1210 = vrot.slane %v1209, 2
        %v1211 = vadd.f32 %v1209, %v1210
        %v1212 = vrot.slane %v1211, 1
        %v1213 = vadd.f32 %v1211, %v1212
        %v1214 = vrot.slane %v1200, 4
        %v1215 = vadd.f32 %v1200, %v1214
        %v1216 = vrot.slane %v1215, 2
        %v1217 = vadd.f32 %v1215, %v1216
        %v1218 = vrot.slane %v1217, 1
        %v1219 = vadd.f32 %v1217, %v1218
        %v1220 = vrot.slane %v1201, 4
        %v1221 = vadd.f32 %v1201, %v1220
        %v1222 = vrot.slane %v1221, 2
        %v1223 = vadd.f32 %v1221, %v1222
        %v1224 = vrot.slane %v1223, 1
        %v1225 = vadd.f32 %v1223, %v1224
        %v1226 = vadd.f32 %v317, %v1207
        %v1227 = vadd.f32 %v317, %v1213
        %v1228 = vadd.f32 %v317, %v1219
        %v1229 = vadd.f32 %v317, %v1225
        %1230 = vset.pattern.permute.xlu0 3
        %1231 = vperm.xlu0 %1230, %v336
        %v1232 = vpop.permute.xlu0 %1231
        %1234 = vset.pattern.permute.xlu0 3
        %1235 = vperm.xlu0 %1234, %v337
        %v1236 = vpop.permute.xlu0 %1235
        %1238 = vset.pattern.permute.xlu0 3
        %1239 = vperm.xlu0 %1238, %v338
        %v1240 = vpop.permute.xlu0 %1239
        %1242 = vset.pattern.permute.xlu0 3
        %1243 = vperm.xlu0 %1242, %v339
        %v1244 = vpop.permute.xlu0 %1243
        %1246 = vset.pattern.permute.xlu0 3
        %1247 = vperm.xlu0 %1246, %v340
        %v1248 = vpop.permute.xlu0 %1247
        %1250 = vset.pattern.permute.xlu0 3
        %1251 = vperm.xlu0 %1250, %v341
        %v1252 = vpop.permute.xlu0 %1251
        %1254 = vset.pattern.permute.xlu0 3
        %1255 = vperm.xlu0 %1254, %v342
        %v1256 = vpop.permute.xlu0 %1255
        %1258 = vset.pattern.permute.xlu0 3
        %1259 = vperm.xlu0 %1258, %v343
        %v1260 = vpop.permute.xlu0 %1259
        %1262 = vrot.lane.b32.xlu0 %v318, 120
        %v1263 = vpop.permute.xlu0 %1262
        %1264 = vrot.lane.b32.xlu0 %v319, 120
        %v1265 = vpop.permute.xlu0 %1264
        %1266 = vrot.lane.b32.xlu0 %v320, 120
        %v1267 = vpop.permute.xlu0 %1266
        %1268 = vrot.lane.b32.xlu0 %v321, 120
        %v1269 = vpop.permute.xlu0 %1268
        %1270 = vrot.lane.b32.xlu0 %v322, 120
        %v1271 = vpop.permute.xlu0 %1270
        %1272 = vrot.lane.b32.xlu0 %v323, 120
        %v1273 = vpop.permute.xlu0 %1272
        %1274 = vrot.lane.b32.xlu0 %v324, 120
        %v1275 = vpop.permute.xlu0 %1274
        %1276 = vrot.lane.b32.xlu0 %v325, 120
        %v1277 = vpop.permute.xlu0 %1276
        %v1278 = vsel %vm384, %v1263, 0
        %v1280 = vsel %vm384, %v1265, 0
        %v1282 = vsel %vm384, %v1267, 0
        %v1284 = vsel %vm384, %v1269, 0
        %v1286 = vsel %vm384, %v1271, 0
        %v1288 = vsel %vm384, %v1273, 0
        %v1290 = vsel %vm384, %v1275, 0
        %v1292 = vsel %vm384, %v1277, 0
        %1294 = vmatprep.subr.mxu0 %v1195
        %1295 = vmatpush1.msra.mxu0 %v1194
        %1296 = vmatprep.subr.mxu0 0.0
        %1297 = vmatpush1.msra.mxu0 0.0
        %1298 = vmatprep.subr.mxu0 0.0
        %1299 = vmatpush1.msra.mxu0 0.0
        %1300 = vmatprep.subr.mxu0 0.0
        %1301 = vmatpush1.msra.mxu0 0.0
        %1302 = vmatprep.subr.mxu0 0.0
        %1303 = vmatpush1.msra.mxu0 0.0
        %1304 = vmatprep.subr.mxu0 0.0
        %1305 = vmatpush1.msra.mxu0 0.0
        %1306 = vmatprep.subr.mxu0 0.0
        %1307 = vmatpush1.msra.mxu0 0.0
        %1308 = vmatprep.subr.mxu0 0.0
        %1309 = vmatpush1.msra.mxu0 0.0
        %1310 = vmatprep.subr.mxu0 0.0
        %1311 = vmatpush1.msra.mxu0 0.0
        %1312 = vmatprep.subr.mxu0 0.0
        %1313 = vmatpush1.msra.mxu0 0.0
        %1314 = vmatprep.subr.mxu0 0.0
        %1315 = vmatpush1.msra.mxu0 0.0
        %1316 = vmatprep.subr.mxu0 0.0
        %1317 = vmatpush1.msra.mxu0 0.0
        %1318 = vmatprep.subr.mxu0 0.0
        %1319 = vmatpush1.msra.mxu0 0.0
        %1320 = vmatprep.subr.mxu0 0.0
        %1321 = vmatpush1.msra.mxu0 0.0
        %1322 = vmatprep.subr.mxu0 0.0
        %1323 = vmatpush1.msra.mxu0 0.0
        %1324 = vmatprep.subr.mxu0 0.0
        %1325 = vmatpush1.msra.mxu0 0.0
        %1326 = vmatprep.subr.mxu0 0.0
        %1327 = vmatpush1.msra.mxu0 0.0
        %1328 = vmatprep.subr.mxu0 0.0
        %1329 = vmatpush1.msra.mxu0 0.0
        %1330 = vmatprep.subr.mxu0 0.0
        %1331 = vmatpush1.msra.mxu0 0.0
        %1332 = vmatprep.subr.mxu0 0.0
        %1333 = vmatpush1.msra.mxu0 0.0
        %1334 = vmatprep.subr.mxu0 0.0
        %1335 = vmatpush1.msra.mxu0 0.0
        %1336 = vmatprep.subr.mxu0 0.0
        %1337 = vmatpush1.msra.mxu0 0.0
        %1338 = vmatprep.subr.mxu0 0.0
        %1339 = vmatpush1.msra.mxu0 0.0
        %1340 = vmatprep.subr.mxu0 0.0
        %1341 = vmatpush1.msra.mxu0 0.0
        %1342 = vmatprep.subr.mxu0 0.0
        %1343 = vmatpush1.msra.mxu0 0.0
        %1344 = vmatprep.subr.mxu0 0.0
        %1345 = vmatpush1.msra.mxu0 0.0
        %1346 = vmatprep.subr.mxu0 0.0
        %1347 = vmatpush1.msra.mxu0 0.0
        %1348 = vmatprep.subr.mxu0 0.0
        %1349 = vmatpush1.msra.mxu0 0.0
        %1350 = vmatprep.subr.mxu0 0.0
        %1351 = vmatpush1.msra.mxu0 0.0
        %1352 = vmatprep.subr.mxu0 0.0
        %1353 = vmatpush1.msra.mxu0 0.0
        %1354 = vmatprep.subr.mxu0 0.0
        %1355 = vmatpush1.msra.mxu0 0.0
        %1356 = vmatprep.subr.mxu0 0.0
        %1357 = vmatpush1.msra.mxu0 0.0
        %1358 = vmatprep.mubr.f32.mxu0 0.0
        %1359 = vmatmul.mubr.f32.gmra.mrb[0].mxu0 %v1278
        %v1360 = vpop.f32.mrb[0].mxu0
        %v1361 = vadd.f32 %v1232, %v1360
        %v1362 = vpop.f32.mrb[0].mxu0
        %v1363 = vadd.f32 %v1232, %v1362
        %1364 = vmatprep.mubr.f32.mxu0 0.0
        %1365 = vmatmul.mubr.f32.gmra.mrb[0].mxu0 %v1280
        %v1366 = vpop.f32.mrb[0].mxu0
        %v1367 = vadd.f32 %v1236, %v1366
        %v1368 = vpop.f32.mrb[0].mxu0
        %v1369 = vadd.f32 %v1236, %v1368
        %1370 = vmatprep.mubr.f32.mxu0 0.0
        %1371 = vmatmul.mubr.f32.gmra.mrb[0].mxu0 %v1282
        %v1372 = vpop.f32.mrb[0].mxu0
        %v1373 = vadd.f32 %v1240, %v1372
        %v1374 = vpop.f32.mrb[0].mxu0
        %v1375 = vadd.f32 %v1240, %v1374
        %1376 = vmatprep.mubr.f32.mxu0 0.0
        %1377 = vmatmul.mubr.f32.gmra.mrb[0].mxu0 %v1284
        %v1378 = vpop.f32.mrb[0].mxu0
        %v1379 = vadd.f32 %v1244, %v1378
        %v1380 = vpop.f32.mrb[0].mxu0
        %v1381 = vadd.f32 %v1244, %v1380
        %1382 = vmatprep.mubr.f32.mxu0 0.0
        %1383 = vmatmul.mubr.f32.gmra.mrb[0].mxu0 %v1286
        %v1384 = vpop.f32.mrb[0].mxu0
        %v1385 = vadd.f32 %v1248, %v1384
        %v1386 = vpop.f32.mrb[0].mxu0
        %v1387 = vadd.f32 %v1248, %v1386
        %1388 = vmatprep.mubr.f32.mxu0 0.0
        %1389 = vmatmul.mubr.f32.gmra.mrb[0].mxu0 %v1288
        %v1390 = vpop.f32.mrb[0].mxu0
        %v1391 = vadd.f32 %v1252, %v1390
        %v1392 = vpop.f32.mrb[0].mxu0
        %v1393 = vadd.f32 %v1252, %v1392
        %1394 = vmatprep.mubr.f32.mxu0 0.0
        %1395 = vmatmul.mubr.f32.gmra.mrb[0].mxu0 %v1290
        %v1396 = vpop.f32.mrb[0].mxu0
        %v1397 = vadd.f32 %v1256, %v1396
        %v1398 = vpop.f32.mrb[0].mxu0
        %v1399 = vadd.f32 %v1256, %v1398
        %1400 = vmatprep.mubr.f32.mxu0 0.0
        %1401 = vmatmul.mubr.f32.gmra.mrb[0].mxu0 %v1292
        %v1402 = vpop.f32.mrb[0].mxu0
        %v1403 = vadd.f32 %v1260, %v1402
        %v1404 = vpop.f32.mrb[0].mxu0
        %v1405 = vadd.f32 %v1260, %v1404
        %1406 = vdwg.mxu0
        %1407 = vmatprep.subr.mxu0 %v1197
        %1408 = vmatpush1.msra.mxu0 %v1196
        %1409 = vmatprep.subr.mxu0 0.0
        %1410 = vmatpush1.msra.mxu0 0.0
        %1411 = vmatprep.subr.mxu0 0.0
        %1412 = vmatpush1.msra.mxu0 0.0
        %1413 = vmatprep.subr.mxu0 0.0
        %1414 = vmatpush1.msra.mxu0 0.0
        %1415 = vmatprep.subr.mxu0 0.0
        %1416 = vmatpush1.msra.mxu0 0.0
        %1417 = vmatprep.subr.mxu0 0.0
        %1418 = vmatpush1.msra.mxu0 0.0
        %1419 = vmatprep.subr.mxu0 0.0
        %1420 = vmatpush1.msra.mxu0 0.0
        %1421 = vmatprep.subr.mxu0 0.0
        %1422 = vmatpush1.msra.mxu0 0.0
        %1423 = vmatprep.subr.mxu0 0.0
        %1424 = vmatpush1.msra.mxu0 0.0
        %1425 = vmatprep.subr.mxu0 0.0
        %1426 = vmatpush1.msra.mxu0 0.0
        %1427 = vmatprep.subr.mxu0 0.0
        %1428 = vmatpush1.msra.mxu0 0.0
        %1429 = vmatprep.subr.mxu0 0.0
        %1430 = vmatpush1.msra.mxu0 0.0
        %1431 = vmatprep.subr.mxu0 0.0
        %1432 = vmatpush1.msra.mxu0 0.0
        %1433 = vmatprep.subr.mxu0 0.0
        %1434 = vmatpush1.msra.mxu0 0.0
        %1435 = vmatprep.subr.mxu0 0.0
        %1436 = vmatpush1.msra.mxu0 0.0
        %1437 = vmatprep.subr.mxu0 0.0
        %1438 = vmatpush1.msra.mxu0 0.0
        %1439 = vmatprep.subr.mxu0 0.0
        %1440 = vmatpush1.msra.mxu0 0.0
        %1441 = vmatprep.subr.mxu0 0.0
        %1442 = vmatpush1.msra.mxu0 0.0
        %1443 = vmatprep.subr.mxu0 0.0
        %1444 = vmatpush1.msra.mxu0 0.0
        %1445 = vmatprep.subr.mxu0 0.0
        %1446 = vmatpush1.msra.mxu0 0.0
        %1447 = vmatprep.subr.mxu0 0.0
        %1448 = vmatpush1.msra.mxu0 0.0
        %1449 = vmatprep.subr.mxu0 0.0
        %1450 = vmatpush1.msra.mxu0 0.0
        %1451 = vmatprep.subr.mxu0 0.0
        %1452 = vmatpush1.msra.mxu0 0.0
        %1453 = vmatprep.subr.mxu0 0.0
        %1454 = vmatpush1.msra.mxu0 0.0
        %1455 = vmatprep.subr.mxu0 0.0
        %1456 = vmatpush1.msra.mxu0 0.0
        %1457 = vmatprep.subr.mxu0 0.0
        %1458 = vmatpush1.msra.mxu0 0.0
        %1459 = vmatprep.subr.mxu0 0.0
        %1460 = vmatpush1.msra.mxu0 0.0
        %1461 = vmatprep.subr.mxu0 0.0
        %1462 = vmatpush1.msra.mxu0 0.0
        %1463 = vmatprep.subr.mxu0 0.0
        %1464 = vmatpush1.msra.mxu0 0.0
        %1465 = vmatprep.subr.mxu0 0.0
        %1466 = vmatpush1.msra.mxu0 0.0
        %1467 = vmatprep.subr.mxu0 0.0
        %1468 = vmatpush1.msra.mxu0 0.0
        %1469 = vmatprep.subr.mxu0 0.0
        %1470 = vmatpush1.msra.mxu0 0.0
        %1471 = vmatprep.mubr.f32.mxu0 0.0
        %1472 = vmatmul.mubr.f32.gmra.mrb[0].mxu0 %v1278
        %v1473 = vpop.f32.mrb[0].mxu0
        %v1474 = vadd.f32 %v1232, %v1473
        %v1475 = vpop.f32.mrb[0].mxu0
        %v1476 = vadd.f32 %v1232, %v1475
        %1477 = vmatprep.mubr.f32.mxu0 0.0
        %1478 = vmatmul.mubr.f32.gmra.mrb[0].mxu0 %v1280
        %v1479 = vpop.f32.mrb[0].mxu0
        %v1480 = vadd.f32 %v1236, %v1479
        %v1481 = vpop.f32.mrb[0].mxu0
        %v1482 = vadd.f32 %v1236, %v1481
        %1483 = vmatprep.mubr.f32.mxu0 0.0
        %1484 = vmatmul.mubr.f32.gmra.mrb[0].mxu0 %v1282
        %v1485 = vpop.f32.mrb[0].mxu0
        %v1486 = vadd.f32 %v1240, %v1485
        %v1487 = vpop.f32.mrb[0].mxu0
        %v1488 = vadd.f32 %v1240, %v1487
        %1489 = vmatprep.mubr.f32.mxu0 0.0
        %1490 = vmatmul.mubr.f32.gmra.mrb[0].mxu0 %v1284
        %v1491 = vpop.f32.mrb[0].mxu0
        %v1492 = vadd.f32 %v1244, %v1491
        %v1493 = vpop.f32.mrb[0].mxu0
        %v1494 = vadd.f32 %v1244, %v1493
        %1495 = vmatprep.mubr.f32.mxu0 0.0
        %1496 = vmatmul.mubr.f32.gmra.mrb[0].mxu0 %v1286
        %v1497 = vpop.f32.mrb[0].mxu0
        %v1498 = vadd.f32 %v1248, %v1497
        %v1499 = vpop.f32.mrb[0].mxu0
        %v1500 = vadd.f32 %v1248, %v1499
        %1501 = vmatprep.mubr.f32.mxu0 0.0
        %1502 = vmatmul.mubr.f32.gmra.mrb[0].mxu0 %v1288
        %v1503 = vpop.f32.mrb[0].mxu0
        %v1504 = vadd.f32 %v1252, %v1503
        %v1505 = vpop.f32.mrb[0].mxu0
        %v1506 = vadd.f32 %v1252, %v1505
        %1507 = vmatprep.mubr.f32.mxu0 0.0
        %1508 = vmatmul.mubr.f32.gmra.mrb[0].mxu0 %v1290
        %v1509 = vpop.f32.mrb[0].mxu0
        %v1510 = vadd.f32 %v1256, %v1509
        %v1511 = vpop.f32.mrb[0].mxu0
        %v1512 = vadd.f32 %v1256, %v1511
        %1513 = vmatprep.mubr.f32.mxu0 0.0
        %1514 = vmatmul.mubr.f32.gmra.mrb[0].mxu0 %v1292
        %v1515 = vpop.f32.mrb[0].mxu0
        %v1516 = vadd.f32 %v1260, %v1515
        %v1517 = vpop.f32.mrb[0].mxu0
        %v1518 = vadd.f32 %v1260, %v1517
        %1519 = vdwg.mxu0
        %v1520 = vmax.f32 %v1361, 0.0
        %v1521 = vmax.f32 %v1363, 0.0
        %v1522 = vmax.f32 %v1474, 0.0
        %v1523 = vmax.f32 %v1476, 0.0
        %v1524 = vmax.f32 %v1367, 0.0
        %v1525 = vmax.f32 %v1369, 0.0
        %v1526 = vmax.f32 %v1480, 0.0
        %v1527 = vmax.f32 %v1482, 0.0
        %v1528 = vmax.f32 %v1373, 0.0
        %v1529 = vmax.f32 %v1375, 0.0
        %v1530 = vmax.f32 %v1486, 0.0
        %v1531 = vmax.f32 %v1488, 0.0
        %v1532 = vmax.f32 %v1379, 0.0
        %v1533 = vmax.f32 %v1381, 0.0
        %v1534 = vmax.f32 %v1492, 0.0
        %v1535 = vmax.f32 %v1494, 0.0
        %v1536 = vmax.f32 %v1385, 0.0
        %v1537 = vmax.f32 %v1387, 0.0
        %v1538 = vmax.f32 %v1498, 0.0
        %v1539 = vmax.f32 %v1500, 0.0
        %v1540 = vmax.f32 %v1391, 0.0
        %v1541 = vmax.f32 %v1393, 0.0
        %v1542 = vmax.f32 %v1504, 0.0
        %v1543 = vmax.f32 %v1506, 0.0
        %v1544 = vmax.f32 %v1397, 0.0
        %v1545 = vmax.f32 %v1399, 0.0
        %v1546 = vmax.f32 %v1510, 0.0
        %v1547 = vmax.f32 %v1512, 0.0
        %v1548 = vmax.f32 %v1403, 0.0
        %v1549 = vmax.f32 %v1405, 0.0
        %v1550 = vmax.f32 %v1516, 0.0
        %v1551 = vmax.f32 %v1518, 0.0
        %1552 = vset.pattern.permute.xlu0 4
        %1553 = vperm.xlu0 %1552, %v336
        %v1554 = vpop.permute.xlu0 %1553
        %1556 = vset.pattern.permute.xlu0 4
        %1557 = vperm.xlu0 %1556, %v337
        %v1558 = vpop.permute.xlu0 %1557
        %1560 = vset.pattern.permute.xlu0 4
        %1561 = vperm.xlu0 %1560, %v338
        %v1562 = vpop.permute.xlu0 %1561
        %1564 = vset.pattern.permute.xlu0 4
        %1565 = vperm.xlu0 %1564, %v339
        %v1566 = vpop.permute.xlu0 %1565
        %1568 = vset.pattern.permute.xlu0 4
        %1569 = vperm.xlu0 %1568, %v340
        %v1570 = vpop.permute.xlu0 %1569
        %1572 = vset.pattern.permute.xlu0 4
        %1573 = vperm.xlu0 %1572, %v341
        %v1574 = vpop.permute.xlu0 %1573
        %1576 = vset.pattern.permute.xlu0 4
        %1577 = vperm.xlu0 %1576, %v342
        %v1578 = vpop.permute.xlu0 %1577
        %1580 = vset.pattern.permute.xlu0 4
        %1581 = vperm.xlu0 %1580, %v343
        %v1582 = vpop.permute.xlu0 %1581
        %1584 = vrot.lane.b32.xlu0 %v326, 64
        %v1585 = vpop.permute.xlu0 %1584
        %1586 = vrot.lane.b32.xlu0 %v327, 64
        %v1587 = vpop.permute.xlu0 %1586
        %1588 = vrot.lane.b32.xlu0 %v328, 64
        %v1589 = vpop.permute.xlu0 %1588
        %1590 = vrot.lane.b32.xlu0 %v329, 64
        %v1591 = vpop.permute.xlu0 %1590
        %1592 = vrot.lane.b32.xlu0 %v330, 64
        %v1593 = vpop.permute.xlu0 %1592
        %1594 = vrot.lane.b32.xlu0 %v331, 64
        %v1595 = vpop.permute.xlu0 %1594
        %1596 = vrot.lane.b32.xlu0 %v332, 64
        %v1597 = vpop.permute.xlu0 %1596
        %1598 = vrot.lane.b32.xlu0 %v333, 64
        %v1599 = vpop.permute.xlu0 %1598
        %v1600 = vsel %vm699, %v1585, 0
        %v1602 = vsel %vm699, %v1587, 0
        %v1604 = vsel %vm699, %v1589, 0
        %v1606 = vsel %vm699, %v1591, 0
        %v1608 = vsel %vm699, %v1593, 0
        %v1610 = vsel %vm699, %v1595, 0
        %v1612 = vsel %vm699, %v1597, 0
        %v1614 = vsel %vm699, %v1599, 0
        %1616 = vmatprep.subr.mxu0 %v1521
        %1617 = vmatpush1.msra.mxu0 %v1520
        %1618 = vmatprep.subr.mxu0 %v1525
        %1619 = vmatpush1.msra.mxu0 %v1524
        %1620 = vmatprep.subr.mxu0 %v1529
        %1621 = vmatpush1.msra.mxu0 %v1528
        %1622 = vmatprep.subr.mxu0 %v1533
        %1623 = vmatpush1.msra.mxu0 %v1532
        %1624 = vmatprep.subr.mxu0 %v1537
        %1625 = vmatpush1.msra.mxu0 %v1536
        %1626 = vmatprep.subr.mxu0 %v1541
        %1627 = vmatpush1.msra.mxu0 %v1540
        %1628 = vmatprep.subr.mxu0 %v1545
        %1629 = vmatpush1.msra.mxu0 %v1544
        %1630 = vmatprep.subr.mxu0 %v1549
        %1631 = vmatpush1.msra.mxu0 %v1548
        %1632 = vmatprep.subr.mxu0 0.0
        %1633 = vmatpush1.msra.mxu0 0.0
        %1634 = vmatprep.subr.mxu0 0.0
        %1635 = vmatpush1.msra.mxu0 0.0
        %1636 = vmatprep.subr.mxu0 0.0
        %1637 = vmatpush1.msra.mxu0 0.0
        %1638 = vmatprep.subr.mxu0 0.0
        %1639 = vmatpush1.msra.mxu0 0.0
        %1640 = vmatprep.subr.mxu0 0.0
        %1641 = vmatpush1.msra.mxu0 0.0
        %1642 = vmatprep.subr.mxu0 0.0
        %1643 = vmatpush1.msra.mxu0 0.0
        %1644 = vmatprep.subr.mxu0 0.0
        %1645 = vmatpush1.msra.mxu0 0.0
        %1646 = vmatprep.subr.mxu0 0.0
        %1647 = vmatpush1.msra.mxu0 0.0
        %1648 = vmatprep.subr.mxu0 0.0
        %1649 = vmatpush1.msra.mxu0 0.0
        %1650 = vmatprep.subr.mxu0 0.0
        %1651 = vmatpush1.msra.mxu0 0.0
        %1652 = vmatprep.subr.mxu0 0.0
        %1653 = vmatpush1.msra.mxu0 0.0
        %1654 = vmatprep.subr.mxu0 0.0
        %1655 = vmatpush1.msra.mxu0 0.0
        %1656 = vmatprep.subr.mxu0 0.0
        %1657 = vmatpush1.msra.mxu0 0.0
        %1658 = vmatprep.subr.mxu0 0.0
        %1659 = vmatpush1.msra.mxu0 0.0
        %1660 = vmatprep.subr.mxu0 0.0
        %1661 = vmatpush1.msra.mxu0 0.0
        %1662 = vmatprep.subr.mxu0 0.0
        %1663 = vmatpush1.msra.mxu0 0.0
        %1664 = vmatprep.subr.mxu0 0.0
        %1665 = vmatpush1.msra.mxu0 0.0
        %1666 = vmatprep.subr.mxu0 0.0
        %1667 = vmatpush1.msra.mxu0 0.0
        %1668 = vmatprep.subr.mxu0 0.0
        %1669 = vmatpush1.msra.mxu0 0.0
        %1670 = vmatprep.subr.mxu0 0.0
        %1671 = vmatpush1.msra.mxu0 0.0
        %1672 = vmatprep.subr.mxu0 0.0
        %1673 = vmatpush1.msra.mxu0 0.0
        %1674 = vmatprep.subr.mxu0 0.0
        %1675 = vmatpush1.msra.mxu0 0.0
        %1676 = vmatprep.subr.mxu0 0.0
        %1677 = vmatpush1.msra.mxu0 0.0
        %1678 = vmatprep.subr.mxu0 0.0
        %1679 = vmatpush1.msra.mxu0 0.0
        %1680 = vmatprep.mubr.f32.mxu0 0.0
        %1681 = vmatmul.mubr.f32.gmra.mrb[0].mxu0 %v1600
        %v1682 = vpop.f32.mrb[0].mxu0
        %v1683 = vadd.f32 %v1554, %v1682
        %v1684 = vpop.f32.mrb[0].mxu0
        %v1685 = vadd.f32 %v1554, %v1684
        %1686 = vmatprep.mubr.f32.mxu0 0.0
        %1687 = vmatmul.mubr.f32.gmra.mrb[0].mxu0 %v1602
        %v1688 = vpop.f32.mrb[0].mxu0
        %v1689 = vadd.f32 %v1558, %v1688
        %v1690 = vpop.f32.mrb[0].mxu0
        %v1691 = vadd.f32 %v1558, %v1690
        %1692 = vmatprep.mubr.f32.mxu0 0.0
        %1693 = vmatmul.mubr.f32.gmra.mrb[0].mxu0 %v1604
        %v1694 = vpop.f32.mrb[0].mxu0
        %v1695 = vadd.f32 %v1562, %v1694
        %v1696 = vpop.f32.mrb[0].mxu0
        %v1697 = vadd.f32 %v1562, %v1696
        %1698 = vmatprep.mubr.f32.mxu0 0.0
        %1699 = vmatmul.mubr.f32.gmra.mrb[0].mxu0 %v1606
        %v1700 = vpop.f32.mrb[0].mxu0
        %v1701 = vadd.f32 %v1566, %v1700
        %v1702 = vpop.f32.mrb[0].mxu0
        %v1703 = vadd.f32 %v1566, %v1702
        %1704 = vmatprep.mubr.f32.mxu0 0.0
        %1705 = vmatmul.mubr.f32.gmra.mrb[0].mxu0 %v1608
        %v1706 = vpop.f32.mrb[0].mxu0
        %v1707 = vadd.f32 %v1570, %v1706
        %v1708 = vpop.f32.mrb[0].mxu0
        %v1709 = vadd.f32 %v1570, %v1708
        %1710 = vmatprep.mubr.f32.mxu0 0.0
        %1711 = vmatmul.mubr.f32.gmra.mrb[0].mxu0 %v1610
        %v1712 = vpop.f32.mrb[0].mxu0
        %v1713 = vadd.f32 %v1574, %v1712
        %v1714 = vpop.f32.mrb[0].mxu0
        %v1715 = vadd.f32 %v1574, %v1714
        %1716 = vmatprep.mubr.f32.mxu0 0.0
        %1717 = vmatmul.mubr.f32.gmra.mrb[0].mxu0 %v1612
        %v1718 = vpop.f32.mrb[0].mxu0
        %v1719 = vadd.f32 %v1578, %v1718
        %v1720 = vpop.f32.mrb[0].mxu0
        %v1721 = vadd.f32 %v1578, %v1720
        %1722 = vmatprep.mubr.f32.mxu0 0.0
        %1723 = vmatmul.mubr.f32.gmra.mrb[0].mxu0 %v1614
        %v1724 = vpop.f32.mrb[0].mxu0
        %v1725 = vadd.f32 %v1582, %v1724
        %v1726 = vpop.f32.mrb[0].mxu0
        %v1727 = vadd.f32 %v1582, %v1726
        %1728 = vdwg.mxu0
        %1729 = vmatprep.subr.mxu0 %v1523
        %1730 = vmatpush1.msra.mxu0 %v1522
        %1731 = vmatprep.subr.mxu0 %v1527
        %1732 = vmatpush1.msra.mxu0 %v1526
        %1733 = vmatprep.subr.mxu0 %v1531
        %1734 = vmatpush1.msra.mxu0 %v1530
        %1735 = vmatprep.subr.mxu0 %v1535
        %1736 = vmatpush1.msra.mxu0 %v1534
        %1737 = vmatprep.subr.mxu0 %v1539
        %1738 = vmatpush1.msra.mxu0 %v1538
        %1739 = vmatprep.subr.mxu0 %v1543
        %1740 = vmatpush1.msra.mxu0 %v1542
        %1741 = vmatprep.subr.mxu0 %v1547
        %1742 = vmatpush1.msra.mxu0 %v1546
        %1743 = vmatprep.subr.mxu0 %v1551
        %1744 = vmatpush1.msra.mxu0 %v1550
        %1745 = vmatprep.subr.mxu0 0.0
        %1746 = vmatpush1.msra.mxu0 0.0
        %1747 = vmatprep.subr.mxu0 0.0
        %1748 = vmatpush1.msra.mxu0 0.0
        %1749 = vmatprep.subr.mxu0 0.0
        %1750 = vmatpush1.msra.mxu0 0.0
        %1751 = vmatprep.subr.mxu0 0.0
        %1752 = vmatpush1.msra.mxu0 0.0
        %1753 = vmatprep.subr.mxu0 0.0
        %1754 = vmatpush1.msra.mxu0 0.0
        %1755 = vmatprep.subr.mxu0 0.0
        %1756 = vmatpush1.msra.mxu0 0.0
        %1757 = vmatprep.subr.mxu0 0.0
        %1758 = vmatpush1.msra.mxu0 0.0
        %1759 = vmatprep.subr.mxu0 0.0
        %1760 = vmatpush1.msra.mxu0 0.0
        %1761 = vmatprep.subr.mxu0 0.0
        %1762 = vmatpush1.msra.mxu0 0.0
        %1763 = vmatprep.subr.mxu0 0.0
        %1764 = vmatpush1.msra.mxu0 0.0
        %1765 = vmatprep.subr.mxu0 0.0
        %1766 = vmatpush1.msra.mxu0 0.0
        %1767 = vmatprep.subr.mxu0 0.0
        %1768 = vmatpush1.msra.mxu0 0.0
        %1769 = vmatprep.subr.mxu0 0.0
        %1770 = vmatpush1.msra.mxu0 0.0
        %1771 = vmatprep.subr.mxu0 0.0
        %1772 = vmatpush1.msra.mxu0 0.0
        %1773 = vmatprep.subr.mxu0 0.0
        %1774 = vmatpush1.msra.mxu0 0.0
        %1775 = vmatprep.subr.mxu0 0.0
        %1776 = vmatpush1.msra.mxu0 0.0
        %1777 = vmatprep.subr.mxu0 0.0
        %1778 = vmatpush1.msra.mxu0 0.0
        %1779 = vmatprep.subr.mxu0 0.0
        %1780 = vmatpush1.msra.mxu0 0.0
        %1781 = vmatprep.subr.mxu0 0.0
        %1782 = vmatpush1.msra.mxu0 0.0
        %1783 = vmatprep.subr.mxu0 0.0
        %1784 = vmatpush1.msra.mxu0 0.0
        %1785 = vmatprep.subr.mxu0 0.0
        %1786 = vmatpush1.msra.mxu0 0.0
        %1787 = vmatprep.subr.mxu0 0.0
        %1788 = vmatpush1.msra.mxu0 0.0
        %1789 = vmatprep.subr.mxu0 0.0
        %1790 = vmatpush1.msra.mxu0 0.0
        %1791 = vmatprep.subr.mxu0 0.0
        %1792 = vmatpush1.msra.mxu0 0.0
        %1793 = vmatprep.mubr.f32.mxu0 0.0
        %1794 = vmatmul.mubr.f32.gmra.mrb[0].mxu0 %v1600
        %v1795 = vpop.f32.mrb[0].mxu0
        %v1796 = vadd.f32 %v1554, %v1795
        %v1797 = vpop.f32.mrb[0].mxu0
        %v1798 = vadd.f32 %v1554, %v1797
        %1799 = vmatprep.mubr.f32.mxu0 0.0
        %1800 = vmatmul.mubr.f32.gmra.mrb[0].mxu0 %v1602
        %v1801 = vpop.f32.mrb[0].mxu0
        %v1802 = vadd.f32 %v1558, %v1801
        %v1803 = vpop.f32.mrb[0].mxu0
        %v1804 = vadd.f32 %v1558, %v1803
        %1805 = vmatprep.mubr.f32.mxu0 0.0
        %1806 = vmatmul.mubr.f32.gmra.mrb[0].mxu0 %v1604
        %v1807 = vpop.f32.mrb[0].mxu0
        %v1808 = vadd.f32 %v1562, %v1807
        %v1809 = vpop.f32.mrb[0].mxu0
        %v1810 = vadd.f32 %v1562, %v1809
        %1811 = vmatprep.mubr.f32.mxu0 0.0
        %1812 = vmatmul.mubr.f32.gmra.mrb[0].mxu0 %v1606
        %v1813 = vpop.f32.mrb[0].mxu0
        %v1814 = vadd.f32 %v1566, %v1813
        %v1815 = vpop.f32.mrb[0].mxu0
        %v1816 = vadd.f32 %v1566, %v1815
        %1817 = vmatprep.mubr.f32.mxu0 0.0
        %1818 = vmatmul.mubr.f32.gmra.mrb[0].mxu0 %v1608
        %v1819 = vpop.f32.mrb[0].mxu0
        %v1820 = vadd.f32 %v1570, %v1819
        %v1821 = vpop.f32.mrb[0].mxu0
        %v1822 = vadd.f32 %v1570, %v1821
        %1823 = vmatprep.mubr.f32.mxu0 0.0
        %1824 = vmatmul.mubr.f32.gmra.mrb[0].mxu0 %v1610
        %v1825 = vpop.f32.mrb[0].mxu0
        %v1826 = vadd.f32 %v1574, %v1825
        %v1827 = vpop.f32.mrb[0].mxu0
        %v1828 = vadd.f32 %v1574, %v1827
        %1829 = vmatprep.mubr.f32.mxu0 0.0
        %1830 = vmatmul.mubr.f32.gmra.mrb[0].mxu0 %v1612
        %v1831 = vpop.f32.mrb[0].mxu0
        %v1832 = vadd.f32 %v1578, %v1831
        %v1833 = vpop.f32.mrb[0].mxu0
        %v1834 = vadd.f32 %v1578, %v1833
        %1835 = vmatprep.mubr.f32.mxu0 0.0
        %1836 = vmatmul.mubr.f32.gmra.mrb[0].mxu0 %v1614
        %v1837 = vpop.f32.mrb[0].mxu0
        %v1838 = vadd.f32 %v1582, %v1837
        %v1839 = vpop.f32.mrb[0].mxu0
        %v1840 = vadd.f32 %v1582, %v1839
        %1841 = vdwg.mxu0
        %v1842 = vmax.f32 %v1683, 0.0
        %v1843 = vmax.f32 %v1685, 0.0
        %v1844 = vmax.f32 %v1796, 0.0
        %v1845 = vmax.f32 %v1798, 0.0
        %v1846 = vmax.f32 %v1689, 0.0
        %v1847 = vmax.f32 %v1691, 0.0
        %v1848 = vmax.f32 %v1802, 0.0
        %v1849 = vmax.f32 %v1804, 0.0
        %v1850 = vmax.f32 %v1695, 0.0
        %v1851 = vmax.f32 %v1697, 0.0
        %v1852 = vmax.f32 %v1808, 0.0
        %v1853 = vmax.f32 %v1810, 0.0
        %v1854 = vmax.f32 %v1701, 0.0
        %v1855 = vmax.f32 %v1703, 0.0
        %v1856 = vmax.f32 %v1814, 0.0
        %v1857 = vmax.f32 %v1816, 0.0
        %v1858 = vmax.f32 %v1707, 0.0
        %v1859 = vmax.f32 %v1709, 0.0
        %v1860 = vmax.f32 %v1820, 0.0
        %v1861 = vmax.f32 %v1822, 0.0
        %v1862 = vmax.f32 %v1713, 0.0
        %v1863 = vmax.f32 %v1715, 0.0
        %v1864 = vmax.f32 %v1826, 0.0
        %v1865 = vmax.f32 %v1828, 0.0
        %v1866 = vmax.f32 %v1719, 0.0
        %v1867 = vmax.f32 %v1721, 0.0
        %v1868 = vmax.f32 %v1832, 0.0
        %v1869 = vmax.f32 %v1834, 0.0
        %v1870 = vmax.f32 %v1725, 0.0
        %v1871 = vmax.f32 %v1727, 0.0
        %v1872 = vmax.f32 %v1838, 0.0
        %v1873 = vmax.f32 %v1840, 0.0
        %1874 = vset.pattern.permute.xlu0 5
        %1875 = vperm.xlu0 %1874, %v336
        %v1876 = vpop.permute.xlu0 %1875
        %1878 = vset.pattern.permute.xlu0 5
        %1879 = vperm.xlu0 %1878, %v337
        %v1880 = vpop.permute.xlu0 %1879
        %1882 = vrot.lane.b32.xlu0 %v334, 64
        %v1883 = vpop.permute.xlu0 %1882
        %1884 = vrot.lane.b32.xlu0 %v335, 64
        %v1885 = vpop.permute.xlu0 %1884
        %v1886 = vsel %vm699, %v1883, 0
        %v1888 = vsel %vm699, %v1885, 0
        %1890 = vmatprep.subr.mxu0 %v1843
        %1891 = vmatpush1.msra.mxu0 %v1842
        %1892 = vmatprep.subr.mxu0 %v1847
        %1893 = vmatpush1.msra.mxu0 %v1846
        %1894 = vmatprep.subr.mxu0 %v1851
        %1895 = vmatpush1.msra.mxu0 %v1850
        %1896 = vmatprep.subr.mxu0 %v1855
        %1897 = vmatpush1.msra.mxu0 %v1854
        %1898 = vmatprep.subr.mxu0 %v1859
        %1899 = vmatpush1.msra.mxu0 %v1858
        %1900 = vmatprep.subr.mxu0 %v1863
        %1901 = vmatpush1.msra.mxu0 %v1862
        %1902 = vmatprep.subr.mxu0 %v1867
        %1903 = vmatpush1.msra.mxu0 %v1866
        %1904 = vmatprep.subr.mxu0 %v1871
        %1905 = vmatpush1.msra.mxu0 %v1870
        %1906 = vmatprep.subr.mxu0 0.0
        %1907 = vmatpush1.msra.mxu0 0.0
        %1908 = vmatprep.subr.mxu0 0.0
        %1909 = vmatpush1.msra.mxu0 0.0
        %1910 = vmatprep.subr.mxu0 0.0
        %1911 = vmatpush1.msra.mxu0 0.0
        %1912 = vmatprep.subr.mxu0 0.0
        %1913 = vmatpush1.msra.mxu0 0.0
        %1914 = vmatprep.subr.mxu0 0.0
        %1915 = vmatpush1.msra.mxu0 0.0
        %1916 = vmatprep.subr.mxu0 0.0
        %1917 = vmatpush1.msra.mxu0 0.0
        %1918 = vmatprep.subr.mxu0 0.0
        %1919 = vmatpush1.msra.mxu0 0.0
        %1920 = vmatprep.subr.mxu0 0.0
        %1921 = vmatpush1.msra.mxu0 0.0
        %1922 = vmatprep.subr.mxu0 0.0
        %1923 = vmatpush1.msra.mxu0 0.0
        %1924 = vmatprep.subr.mxu0 0.0
        %1925 = vmatpush1.msra.mxu0 0.0
        %1926 = vmatprep.subr.mxu0 0.0
        %1927 = vmatpush1.msra.mxu0 0.0
        %1928 = vmatprep.subr.mxu0 0.0
        %1929 = vmatpush1.msra.mxu0 0.0
        %1930 = vmatprep.subr.mxu0 0.0
        %1931 = vmatpush1.msra.mxu0 0.0
        %1932 = vmatprep.subr.mxu0 0.0
        %1933 = vmatpush1.msra.mxu0 0.0
        %1934 = vmatprep.subr.mxu0 0.0
        %1935 = vmatpush1.msra.mxu0 0.0
        %1936 = vmatprep.subr.mxu0 0.0
        %1937 = vmatpush1.msra.mxu0 0.0
        %1938 = vmatprep.subr.mxu0 0.0
        %1939 = vmatpush1.msra.mxu0 0.0
        %1940 = vmatprep.subr.mxu0 0.0
        %1941 = vmatpush1.msra.mxu0 0.0
        %1942 = vmatprep.subr.mxu0 0.0
        %1943 = vmatpush1.msra.mxu0 0.0
        %1944 = vmatprep.subr.mxu0 0.0
        %1945 = vmatpush1.msra.mxu0 0.0
        %1946 = vmatprep.subr.mxu0 0.0
        %1947 = vmatpush1.msra.mxu0 0.0
        %1948 = vmatprep.subr.mxu0 0.0
        %1949 = vmatpush1.msra.mxu0 0.0
        %1950 = vmatprep.subr.mxu0 0.0
        %1951 = vmatpush1.msra.mxu0 0.0
        %1952 = vmatprep.subr.mxu0 0.0
        %1953 = vmatpush1.msra.mxu0 0.0
        %1954 = vmatprep.mubr.f32.mxu0 0.0
        %1955 = vmatmul.mubr.f32.gmra.mrb[0].mxu0 %v1886
        %v1956 = vpop.f32.mrb[0].mxu0
        %v1957 = vadd.f32 %v1876, %v1956
        %v1958 = vpop.f32.mrb[0].mxu0
        %v1959 = vadd.f32 %v1876, %v1958
        %1960 = vmatprep.mubr.f32.mxu0 0.0
        %1961 = vmatmul.mubr.f32.gmra.mrb[0].mxu0 %v1888
        %v1962 = vpop.f32.mrb[0].mxu0
        %v1963 = vadd.f32 %v1880, %v1962
        %v1964 = vpop.f32.mrb[0].mxu0
        %v1965 = vadd.f32 %v1880, %v1964
        %1966 = vdwg.mxu0
        %1967 = vmatprep.subr.mxu0 %v1845
        %1968 = vmatpush1.msra.mxu0 %v1844
        %1969 = vmatprep.subr.mxu0 %v1849
        %1970 = vmatpush1.msra.mxu0 %v1848
        %1971 = vmatprep.subr.mxu0 %v1853
        %1972 = vmatpush1.msra.mxu0 %v1852
        %1973 = vmatprep.subr.mxu0 %v1857
        %1974 = vmatpush1.msra.mxu0 %v1856
        %1975 = vmatprep.subr.mxu0 %v1861
        %1976 = vmatpush1.msra.mxu0 %v1860
        %1977 = vmatprep.subr.mxu0 %v1865
        %1978 = vmatpush1.msra.mxu0 %v1864
        %1979 = vmatprep.subr.mxu0 %v1869
        %1980 = vmatpush1.msra.mxu0 %v1868
        %1981 = vmatprep.subr.mxu0 %v1873
        %1982 = vmatpush1.msra.mxu0 %v1872
        %1983 = vmatprep.subr.mxu0 0.0
        %1984 = vmatpush1.msra.mxu0 0.0
        %1985 = vmatprep.subr.mxu0 0.0
        %1986 = vmatpush1.msra.mxu0 0.0
        %1987 = vmatprep.subr.mxu0 0.0
        %1988 = vmatpush1.msra.mxu0 0.0
        %1989 = vmatprep.subr.mxu0 0.0
        %1990 = vmatpush1.msra.mxu0 0.0
        %1991 = vmatprep.subr.mxu0 0.0
        %1992 = vmatpush1.msra.mxu0 0.0
        %1993 = vmatprep.subr.mxu0 0.0
        %1994 = vmatpush1.msra.mxu0 0.0
        %1995 = vmatprep.subr.mxu0 0.0
        %1996 = vmatpush1.msra.mxu0 0.0
        %1997 = vmatprep.subr.mxu0 0.0
        %1998 = vmatpush1.msra.mxu0 0.0
        %1999 = vmatprep.subr.mxu0 0.0
        %2000 = vmatpush1.msra.mxu0 0.0
        %2001 = vmatprep.subr.mxu0 0.0
        %2002 = vmatpush1.msra.mxu0 0.0
        %2003 = vmatprep.subr.mxu0 0.0
        %2004 = vmatpush1.msra.mxu0 0.0
        %2005 = vmatprep.subr.mxu0 0.0
        %2006 = vmatpush1.msra.mxu0 0.0
        %2007 = vmatprep.subr.mxu0 0.0
        %2008 = vmatpush1.msra.mxu0 0.0
        %2009 = vmatprep.subr.mxu0 0.0
        %2010 = vmatpush1.msra.mxu0 0.0
        %2011 = vmatprep.subr.mxu0 0.0
        %2012 = vmatpush1.msra.mxu0 0.0
        %2013 = vmatprep.subr.mxu0 0.0
        %2014 = vmatpush1.msra.mxu0 0.0
        %2015 = vmatprep.subr.mxu0 0.0
        %2016 = vmatpush1.msra.mxu0 0.0
        %2017 = vmatprep.subr.mxu0 0.0
        %2018 = vmatpush1.msra.mxu0 0.0
        %2019 = vmatprep.subr.mxu0 0.0
        %2020 = vmatpush1.msra.mxu0 0.0
        %2021 = vmatprep.subr.mxu0 0.0
        %2022 = vmatpush1.msra.mxu0 0.0
        %2023 = vmatprep.subr.mxu0 0.0
        %2024 = vmatpush1.msra.mxu0 0.0
        %2025 = vmatprep.subr.mxu0 0.0
        %2026 = vmatpush1.msra.mxu0 0.0
        %2027 = vmatprep.subr.mxu0 0.0
        %2028 = vmatpush1.msra.mxu0 0.0
        %2029 = vmatprep.subr.mxu0 0.0
        %2030 = vmatpush1.msra.mxu0 0.0
        %2031 = vmatprep.mubr.f32.mxu0 0.0
        %2032 = vmatmul.mubr.f32.gmra.mrb[0].mxu0 %v1886
        %v2033 = vpop.f32.mrb[0].mxu0
        %v2034 = vadd.f32 %v1876, %v2033
        %v2035 = vpop.f32.mrb[0].mxu0
        %v2036 = vadd.f32 %v1876, %v2035
        %2037 = vmatprep.mubr.f32.mxu0 0.0
        %2038 = vmatmul.mubr.f32.gmra.mrb[0].mxu0 %v1888
        %v2039 = vpop.f32.mrb[0].mxu0
        %v2040 = vadd.f32 %v1880, %v2039
        %v2041 = vpop.f32.mrb[0].mxu0
        %v2042 = vadd.f32 %v1880, %v2041
        %2043 = vdwg.mxu0
        %v2044 = vmax.f32 %v1957, 0.0
        %v2045 = vmax.f32 %v1959, 0.0
        %v2046 = vmax.f32 %v2034, 0.0
        %v2047 = vmax.f32 %v2036, 0.0
        %2048 = vset.pattern.permute.xlu0 5
        %2049 = vperm.xlu0 %2048, %v293
        %v2050 = vpop.permute.xlu0 %2049
        %v2052 = vmul.f32 %v2044, %v2050
        %v2053 = vmul.f32 %v2045, %v2050
        %v2054 = vmul.f32 %v2046, %v2050
        %v2055 = vmul.f32 %v2047, %v2050
        %2056 = vset.pattern.permute.xlu0 6
        %2057 = vperm.xlu0 %2056, %v293
        %v2058 = vpop.permute.xlu0 %2057
        %v2060 = vmul.f32 %v2058, %v1194
        %v2061 = vmul.f32 %v2058, %v1195
        %v2062 = vmul.f32 %v2058, %v1196
        %v2063 = vmul.f32 %v2058, %v1197
        %v2064 = vmul.f32 %v2052, 1.442695
        %v2065 = vpow.pop %v2064
        %v2066 = vmul.f32 %v2053, 1.442695
        %v2067 = vpow.pop %v2066
        %v2068 = vmul.f32 %v2054, 1.442695
        %v2069 = vpow.pop %v2068
        %v2070 = vmul.f32 %v2055, 1.442695
        %v2071 = vpow.pop %v2070
        %v2072 = vmul.f32 %v1194, %v2065
        %v2073 = vmul.f32 %v1195, %v2067
        %v2074 = vmul.f32 %v1196, %v2069
        %v2075 = vmul.f32 %v1197, %v2071
        %v2076 = vadd.f32 %v2072, %v1963
        %v2077 = vadd.f32 %v2073, %v1965
        %v2078 = vadd.f32 %v2074, %v2040
        %v2079 = vadd.f32 %v2075, %v2042
        %2080 = vset.pattern.permute.xlu0 7
        %2081 = vperm.xlu0 %2080, %v293
        %v2082 = vpop.permute.xlu0 %2081
        %v2084 = vmul.f32 %v2082, %v2076
        %v2085 = vmul.f32 %v2082, %v2077
        %v2086 = vmul.f32 %v2082, %v2078
        %v2087 = vmul.f32 %v2082, %v2079
        %v2088 = vadd.f32 %v2060, %v2084
        %v2089 = vadd.f32 %v2061, %v2085
        %v2090 = vadd.f32 %v2062, %v2086
        %v2091 = vadd.f32 %v2063, %v2087
        %v2092 = vmul.f32 %v2082, %v2052
        %v2093 = vmul.f32 %v2082, %v2053
        %v2094 = vmul.f32 %v2082, %v2054
        %v2095 = vmul.f32 %v2082, %v2055
        %v2096 = vrot.slane %v2092, 4
        %v2097 = vadd.f32 %v2092, %v2096
        %v2098 = vrot.slane %v2097, 2
        %v2099 = vadd.f32 %v2097, %v2098
        %v2100 = vrot.slane %v2099, 1
        %v2101 = vadd.f32 %v2099, %v2100
        %v2102 = vrot.slane %v2093, 4
        %v2103 = vadd.f32 %v2093, %v2102
        %v2104 = vrot.slane %v2103, 2
        %v2105 = vadd.f32 %v2103, %v2104
        %v2106 = vrot.slane %v2105, 1
        %v2107 = vadd.f32 %v2105, %v2106
        %v2108 = vrot.slane %v2094, 4
        %v2109 = vadd.f32 %v2094, %v2108
        %v2110 = vrot.slane %v2109, 2
        %v2111 = vadd.f32 %v2109, %v2110
        %v2112 = vrot.slane %v2111, 1
        %v2113 = vadd.f32 %v2111, %v2112
        %v2114 = vrot.slane %v2095, 4
        %v2115 = vadd.f32 %v2095, %v2114
        %v2116 = vrot.slane %v2115, 2
        %v2117 = vadd.f32 %v2115, %v2116
        %v2118 = vrot.slane %v2117, 1
        %v2119 = vadd.f32 %v2117, %v2118
        %v2120 = vadd.f32 %v1226, %v2101
        %v2121 = vadd.f32 %v1227, %v2107
        %v2122 = vadd.f32 %v1228, %v2113
        %v2123 = vadd.f32 %v1229, %v2119
        %2124 = vst [vmem:[%s277] sm:$0xff] %v2088
        %2125 = vst [vmem:[%s277 + $0x8] sm:$0xff] %v2089
        %2126 = vst [vmem:[%s277 + $0x10] sm:$0xff] %v2090
        %2127 = vst [vmem:[%s277 + $0x18] sm:$0xff] %v2091
        %v2132 = vcombine.low %v2120, %v2121
        %v2133 = vcombine.low %v2122, %v2123
        %v2135 = vunpack.c.l.s4 1966171168
        %v2136 = vunpack.c.0.s8 %v2135
        %v2137 = vlaneseq
        %v2138 = vshrl.u32 %v2137, 7
        %v2139 = vsub.s32 %v2136, %v2138
        %v2140 = vrot.slane %v2132, %v2139
        %v2142 = vunpack.c.l.s4 1966171168
        %v2143 = vunpack.c.0.s8 %v2142
        %v2144 = vlaneseq
        %v2145 = vshrl.u32 %v2144, 7
        %v2146 = vsub.s32 %v2143, %v2145
        %v2147 = vrot.slane %v2133, %v2146
        %v2148 = vcombine.low %v2140, %v2147
        %v2150 = vunpack.c.l.s4 1966171168
        %v2151 = vunpack.c.0.s8 %v2150
        %v2152 = vlaneseq
        %v2153 = vshrl.u32 %v2152, 7
        %v2154 = vsub.s32 %v2151, %v2153
        %v2155 = vrot.slane %v2148, %v2154
        %v2157 = vlaneseq
        %vm2158 = vcmp.ge.s32.totalorder %v2157, 0
        %vm2159 = vcmp.lt.s32.totalorder %v2157, 512
        %vm2160 = vmand %vm2158, %vm2159
        %2161 = vst.msk [vmem:[%s284] sm:$0xf] %vm2160, %v2155
        %s2162 = sand.u32 %s165, 1
        %s2163 = scalar_lea.sflag [#allocation4], %s2162
        %s2164 = sand.u32 %s165, 1
        %s2165 = smul.addr %s2164, 32
        %s2166 = scalar_lea.vmem [#allocation3], %s2165
        %s2167 = sand.u32 %s191, 1
        %s2168 = scalar_lea.sflag [#allocation6], %s2167
        %s2169 = sand.u32 %s191, 1
        %s2170 = smul.addr %s2169, 4
        %s2171 = scalar_lea.vmem [#allocation5], %s2170
        // Predicated region
        $region45: #{tpu_custom_call.1} parent=43 // pred_check
          %p2172 = pneg %p175
        $region46: #{tpu_custom_call.1} parent=43 // pred_check_branch
          %2174 = sbr.rel (%p2172) target = $region48
        $region47: #{tpu_custom_call.1} parent=43 // pred_region
          %s2175 = smul.u32 4, %s26
          %s2177 = ssub.s32 512, 512
          %2178 = vsyncadd %s2163, %s2177
          %s2179 = smul.addr %s2175, 128
          %s2180 = scalar_lea.hbm %s6, %s2179
          %s2182 = sshll.u32 %s2166, 4
          %s2183 = int_to_ptr.vmem [resolvable:$true] %s2182
          %2185 = dma.vmem_to_hbm [thread:$0]  %s2183, 512, %s2180, %s2163
        $region48: #{tpu_custom_call.1} parent=43 // pred_fallthru
          _
        // Predicated region
        $region49: #{tpu_custom_call.1} parent=43 // pred_check
          %p2186 = pneg %p201
        $region50: #{tpu_custom_call.1} parent=43 // pred_check_branch
          %2188 = sbr.rel (%p2186) target = $region52
        $region51: #{tpu_custom_call.1} parent=43 // pred_region
          %s2189 = smul.u32 4, %s26
          %s2191 = ssub.s32 64, 64
          %2192 = vsyncadd %s2168, %s2191
          %s2193 = smul.addr %s2189, 16
          %s2194 = scalar_lea.hbm %s7, %s2193
          %s2196 = sshll.u32 %s2171, 4
          %s2197 = int_to_ptr.vmem [resolvable:$true] %s2196
          %2199 = dma.vmem_to_hbm [thread:$0]  %s2197, 64, %s2194, %s2168
        $region52: #{tpu_custom_call.1} parent=43 // pred_fallthru
          _
      $region44: #{tpu_custom_call.1} parent=5 // pred_fallthru
        _
      %p2200 = scmp.le.s32.totalorder 2, %s21
      // Predicated region
      $region53: #{tpu_custom_call.1} parent=5 // pred_check
        %p2201 = pneg %p2200
      $region54: #{tpu_custom_call.1} parent=5 // pred_check_branch
        %2203 = sbr.rel (%p2201) target = $region56
      $region55: #{tpu_custom_call.1} parent=5 // pred_region
        %s2204 = ssub.s32 %s21, 2
        // Predicated region
        $region57: #{tpu_custom_call.1} parent=55 // pred_check
          %p2205 = pneg %p181
        $region58: #{tpu_custom_call.1} parent=55 // pred_check_branch
          %2207 = sbr.rel (%p2205) target = $region60
        $region59: #{tpu_custom_call.1} parent=55 // pred_region
          %s2208 = sand.u32 %s166, 1
          %s2209 = scalar_lea.sflag [#allocation4], %s2208
          %s2210 = sand.u32 %s166, 1
          %s2211 = smul.addr %s2210, 32
          %s2212 = scalar_lea.vmem [#allocation3], %s2211
          %2213 = dma.done %s2209, 512
        $region60: #{tpu_custom_call.1} parent=55 // pred_fallthru
          _
        // Predicated region
        $region61: #{tpu_custom_call.1} parent=55 // pred_check
          %p2214 = pneg %p207
        $region62: #{tpu_custom_call.1} parent=55 // pred_check_branch
          %2216 = sbr.rel (%p2214) target = $region64
        $region63: #{tpu_custom_call.1} parent=55 // pred_region
          %s2217 = sand.u32 %s192, 1
          %s2218 = scalar_lea.sflag [#allocation6], %s2217
          %s2219 = sand.u32 %s192, 1
          %s2220 = smul.addr %s2219, 4
          %s2221 = scalar_lea.vmem [#allocation5], %s2220
          %2222 = dma.done %s2218, 64
        $region64: #{tpu_custom_call.1} parent=55 // pred_fallthru
          _
      $region56: #{tpu_custom_call.1} parent=5 // pred_fallthru
        _
    $region6: #{tpu_custom_call.1} parent=1 // loop_footer
      %s25 = sadd.s32 1, %s21
    $region7: #{tpu_custom_call.1} parent=1 // loop_footer_branch
      %20 = sbr.rel target = $region3
    $region8: #{tpu_custom_call.1} parent=1 // loop_exit
      _
    %2223 = vsyncpa [#allocation4], 1
    %s2224 = scalar_lea.sflag [#allocation4], 1
    %2225 = vsyncpa %s2224, 1
    %2226 = vsyncpa [#allocation6], 1
    %s2227 = scalar_lea.sflag [#allocation6], 1
    %2228 = vsyncpa %s2227, 1

</llo_original>
